<compile_context>
chip_gen: v6e
topology: v6e:2x2x1
jax: 0.10.0
libtpu: 0.0.40
codegen_flags: <defaults>
</compile_context>

<pallas_src>
from functools import partial

import jax
import jax.numpy as jnp
import numpy as np
from jax.experimental import pallas as pl
from jax.experimental.pallas import tpu as pltpu

_EPS = 1e-5  # PyTorch BatchNorm1d default eps


# ----------------------------- tiling heuristics -----------------------------
def _pick_l_tile(L, override=None):
    if override is not None:
        assert override == L or (L % override == 0 and override % 128 == 0)
        return override
    for lt in (2048, 1024, 512, 256, 128):
        if L % lt == 0:
            return lt
    return L  # L < 128 or not 128-aligned: single full-length block (allowed: equals full dim)


def _pick_batch_tile(N, C, LT):
    """Batch rows per grid step. Amortizes per-step overhead for large N while keeping
    at least two parallel batch steps (v7x megacore) and ~2 MiB of f32 activations/step."""
    tb = 1
    for cand in (2, 4, 8, 16):
        if N % cand != 0:
            continue
        if cand * C * LT * 4 > (1 << 21):
            break
        if N // cand < 2:
            break
        tb = cand
    return tb


# ----------------------------- kernels -----------------------------
def _conv3_taps(h, taps, lane, lh, rh):
    """3-tap conv along lanes as three accumulated MXU dots (no (3C, L) concat buffer).
    h: (C, LT) f32. taps = (w_k0, w_k1, w_k2), each (C_out, C_in).
    lane: (C, LT) iota along L. lh/rh: (C, 1) halo columns — the value of the conv input
    just left / just right of this tile (already zero at the true sequence edges)."""
    w0, w1, w2 = taps
    LT = h.shape[-1]
    h_m1 = jnp.where(lane == 0, lh, pltpu.roll(h, 1, axis=1))            # x[l-1]
    h_p1 = jnp.where(lane == LT - 1, rh, pltpu.roll(h, LT - 1, axis=1))  # x[l+1]
    y = jnp.dot(w1, h, preferred_element_type=jnp.float32)
    y = y + jnp.dot(w0, h_m1, preferred_element_type=jnp.float32)
    y = y + jnp.dot(w2, h_p1, preferred_element_type=jnp.float32)
    return y


def _conv_stats_kernel(x_ref, w_ref, halo_ref, y_ref, stats_ref):
    """Layer-1 conv (bias dropped) + accumulated per-channel [sum, sumsq] over (TB, LT)."""
    TB, C, LT = x_ref.shape

    @pl.when(pl.program_id(1) == 0)
    def _init():
        stats_ref[...] = jnp.zeros_like(stats_ref)

    taps = (w_ref[0], w_ref[1], w_ref[2])
    lane = jax.lax.broadcasted_iota(jnp.int32, (C, LT), 1)
    hal = halo_ref[0].astype(jnp.float32)                 # (TB, C, 2)
    st = jnp.zeros((C, 2), jnp.float32)
    for b in range(TB):                                   # static unroll over batch rows
        y = _conv3_taps(x_ref[b].astype(jnp.float32), taps, lane,
                        hal[b, :, 0:1], hal[b, :, 1:2])
        y_ref[b] = y.astype(y_ref.dtype)
        st = st + jnp.concatenate(
            [jnp.sum(y, axis=-1, keepdims=True),
             jnp.sum(y * y, axis=-1, keepdims=True)], axis=-1)
    stats_ref[...] += st[None]


def _bn_relu_conv_stats_kernel(y1_ref, scale_ref, shift_ref, w_ref, halo_ref,
                               y2_ref, stats_ref):
    """BN1 folded to a per-channel FMA + ReLU, then layer-2 conv + accumulated stats."""
    TB, C, LT = y1_ref.shape

    @pl.when(pl.program_id(1) == 0)
    def _init():
        stats_ref[...] = jnp.zeros_like(stats_ref)

    taps = (w_ref[0], w_ref[1], w_ref[2])
    lane = jax.lax.broadcasted_iota(jnp.int32, (C, LT), 1)
    scale = scale_ref[...]
    shift = shift_ref[...]
    hal = halo_ref[0].astype(jnp.float32)                 # halo already has BN+ReLU applied
    st = jnp.zeros((C, 2), jnp.float32)
    for b in range(TB):
        h = jnp.maximum(y1_ref[b].astype(jnp.float32) * scale + shift, 0.0)
        y = _conv3_taps(h, taps, lane, hal[b, :, 0:1], hal[b, :, 1:2])
        y2_ref[b] = y.astype(y2_ref.dtype)
        st = st + jnp.concatenate(
            [jnp.sum(y, axis=-1, keepdims=True),
             jnp.sum(y * y, axis=-1, keepdims=True)], axis=-1)
    stats_ref[...] += st[None]


def _bn_relu_residual_kernel(y2_ref, scale_ref, shift_ref, x_ref, out_ref):
    """BN2 (FMA) + ReLU + residual add."""
    h = jnp.maximum(y2_ref[...].astype(jnp.float32) * scale_ref[...] + shift_ref[...], 0.0)
    out_ref[...] = (h + x_ref[...].astype(jnp.float32)).astype(out_ref.dtype)


# ----------------------------- wrapper helpers -----------------------------
def _bn_affine(stats, gamma, beta, count):
    """stats: (NB, C, 2) per-batch-tile [sum, sumsq]. Returns per-channel (C,1) scale/shift."""
    tot = jnp.sum(stats, axis=0)                          # (C, 2) — tiny XLA reduce
    mean = tot[:, 0] / count
    # TODO(synk): switch to per-tile centered sums / Welford merge if the conv-output mean
    # ever dwarfs its std (E[x^2]-E[x]^2 cancellation); clamped at 0 for safety.
    var = jnp.maximum(tot[:, 1] / count - mean * mean, 0.0)
    scale = gamma.astype(jnp.float32) * jax.lax.rsqrt(var + _EPS)
    shift = beta.astype(jnp.float32) - mean * scale
    return scale[:, None], shift[:, None]                 # (C, 1): broadcasts along lanes


def _tile_halos(a, LT, NL, transform=None):
    """For each L-tile l: the conv-input column just left (l*LT-1) and just right ((l+1)*LT)
    of the tile, zeroed at the true sequence edges (Conv1d zero padding). `transform`
    (e.g. the previous layer's folded BN+ReLU) is applied BEFORE the edge mask so the
    sequence edges stay exactly zero. Returns a tiny (NL, N, C, 2) float32 array."""
    N, C, L = a.shape
    if NL == 1:
        return jnp.zeros((1, N, C, 2), jnp.float32)
    a = a.astype(jnp.float32)
    idx_l = np.clip(np.arange(NL) * LT - 1, 0, L - 1)
    idx_r = np.clip((np.arange(NL) + 1) * LT, 0, L - 1)
    lh = jnp.take(a, jnp.asarray(idx_l), axis=-1)         # (N, C, NL)
    rh = jnp.take(a, jnp.asarray(idx_r), axis=-1)
    if transform is not None:
        lh, rh = transform(lh), transform(rh)
    lmask = jnp.asarray(np.arange(NL) >= 1, jnp.float32)
    rmask = jnp.asarray(np.arange(NL) <= NL - 2, jnp.float32)
    halos = jnp.stack([lh * lmask, rh * rmask], axis=-1)  # (N, C, NL, 2)
    return jnp.transpose(halos, (2, 0, 1, 3))             # (NL, N, C, 2)


# ----------------------------- forward -----------------------------
@partial(jax.jit, static_argnames=("interstage_dtype", "l_tile"))
def resblock_forward(x_ncl, params, *, interstage_dtype=jnp.bfloat16, l_tile=None):
    """x_ncl: (N, C, L) float32, PyTorch NCL convention. Returns (N, C, L) float32."""
    x = x_ncl.astype(jnp.float32)
    N, C, L = x.shape
    LT = _pick_l_tile(L, l_tile)
    NL = L // LT
    TB = _pick_batch_tile(N, C, LT)
    NB = N // TB

    act_spec = pl.BlockSpec((TB, C, LT), lambda nb, l: (nb, 0, l))
    w_spec = pl.BlockSpec((3, C, C), lambda nb, l: (0, 0, 0))
    halo_spec = pl.BlockSpec((1, TB, C, 2), lambda nb, l: (l, nb, 0, 0))
    cvec_spec = pl.BlockSpec((C, 1), lambda nb, l: (0, 0))
    stat_spec = pl.BlockSpec((1, C, 2), lambda nb, l: (nb, 0, 0))   # resident across L tiles

    y_shape = jax.ShapeDtypeStruct((N, C, L), interstage_dtype)
    stats_shape = jax.ShapeDtypeStruct((NB, C, 2), jnp.float32)
    out_shape = jax.ShapeDtypeStruct((N, C, L), jnp.float32)

    conv_params = pltpu.CompilerParams(dimension_semantics=("parallel", "arbitrary"))
    ew_params = pltpu.CompilerParams(dimension_semantics=("parallel", "parallel"))

    # PyTorch conv weight (C_out, C_in, 3) -> (3, C_out, C_in): taps k=0|1|2 = x[l-1]|x[l]|x[l+1]
    w1 = jnp.transpose(params["w1"].astype(jnp.float32), (2, 0, 1))
    w2 = jnp.transpose(params["w2"].astype(jnp.float32), (2, 0, 1))
    # Conv biases intentionally unused: exactly cancelled by training-mode BN mean subtraction.

    # --- layer 1: conv (3 accumulated dots) + accumulated per-channel BN partial stats ---
    halo1 = _tile_halos(x, LT, NL)
    y1, s1 = pl.pallas_call(
        _conv_stats_kernel,
        grid=(NB, NL),
        in_specs=[act_spec, w_spec, halo_spec],
        out_specs=(act_spec, stat_spec),
        out_shape=(y_shape, stats_shape),
        compiler_params=conv_params,
    )(x, w1, halo1)
    scale1, shift1 = _bn_affine(s1, params["g1"], params["be1"], N * L)

    # --- layer 2: BN1 (folded FMA) + ReLU + conv2 + stats, fused ---
    halo2 = _tile_halos(
        y1, LT, NL,
        transform=lambda v: jnp.maximum(v * scale1[None] + shift1[None], 0.0))
    y2, s2 = pl.pallas_call(
        _bn_relu_conv_stats_kernel,
        grid=(NB, NL),
        in_specs=[act_spec, cvec_spec, cvec_spec, w_spec, halo_spec],
        out_specs=(act_spec, stat_spec),
        out_shape=(y_shape, stats_shape),
        compiler_params=conv_params,
    )(y1, scale1, shift1, w2, halo2)
    scale2, shift2 = _bn_affine(s2, params["g2"], params["be2"], N * L)

    # --- BN2 (FMA) + ReLU + residual add (alias output onto y2 when dtypes match) ---
    alias = {0: 0} if jnp.dtype(interstage_dtype) == jnp.dtype(jnp.float32) else {}
    out = pl.pallas_call(
        _bn_relu_residual_kernel,
        grid=(NB, NL),
        in_specs=[act_spec, cvec_spec, cvec_spec, act_spec],
        out_specs=act_spec,
        out_shape=out_shape,
        compiler_params=ew_params,
        input_output_aliases=alias,
    )(y2, scale2, shift2, x)
    return out


# ---------------- pure-JAX reference (for correctness check) ----------------
def _ref_forward(x_ncl, params):
    def conv1d(x, w, b):
        y = jax.lax.conv_general_dilated(
            x, w, window_strides=(1,), padding=[(1, 1)],
            dimension_numbers=("NCH", "OIH", "NCH"))
        return y + b[None, :, None]

    def bn_relu(x, g, be):
        mean = jnp.mean(x, axis=(0, 2), keepdims=True)
        var = jnp.mean((x - mean) ** 2, axis=(0, 2), keepdims=True)
        y = (x - mean) * jax.lax.rsqrt(var + _EPS)
        y = y * g[None, :, None] + be[None, :, None]
        return jax.nn.relu(y)

    h = bn_relu(conv1d(x_ncl, params["w1"], params["b1"]), params["g1"], params["be1"])
    h = bn_relu(conv1d(h, params["w2"], params["b2"]), params["g2"], params["be2"])
    return h + x_ncl


if __name__ == "__main__":
    # Channels on the sublane axis (8); length on the lane axis. L=512 lets the forced
    # 128-lane tiling exercise the halo / stats-accumulation path (4 L-tiles per batch row).
    N, C, L = 2, 8, 512
    key = jax.random.PRNGKey(0)
    ks = jax.random.split(key, 9)

    params = {
        "w1": 0.1 * jax.random.normal(ks[0], (C, C, 3), jnp.float32),
        "b1": 0.1 * jax.random.normal(ks[1], (C,), jnp.float32),
        "g1": 1.0 + 0.1 * jax.random.normal(ks[2], (C,), jnp.float32),
        "be1": 0.1 * jax.random.normal(ks[3], (C,), jnp.float32),
        "w2": 0.1 * jax.random.normal(ks[4], (C, C, 3), jnp.float32),
        "b2": 0.1 * jax.random.normal(ks[5], (C,), jnp.float32),
        "g2": 1.0 + 0.1 * jax.random.normal(ks[6], (C,), jnp.float32),
        "be2": 0.1 * jax.random.normal(ks[7], (C,), jnp.float32),
    }
    x = jax.random.normal(ks[8], (N, C, L), jnp.float32)

    ref = jax.block_until_ready(_ref_forward(x, params))

    # f32 inter-stage activations + forced L_TILE=128 (4 L-tiles): exercises halo splicing,
    # stats accumulation across the "arbitrary" L axis, and the output<-y2 aliasing path.
    out_f32 = jax.block_until_ready(
        resblock_forward(x, params, interstage_dtype=jnp.float32, l_tile=128))
    np.testing.assert_allclose(np.asarray(out_f32), np.asarray(ref), rtol=1e-3, atol=1e-3)

    # Default config: bf16 inter-stage activations (halved HBM traffic for calls 2/3),
    # auto tile size. bf16 storage of intermediates costs ~0.4% relative error.
    out_bf16 = jax.block_until_ready(resblock_forward(x, params))
    np.testing.assert_allclose(np.asarray(out_bf16), np.asarray(ref), rtol=2e-2, atol=2e-2)

    print("KERNEL_OK")
</pallas_src>

<mosaic_0001>
module attributes {stable_mosaic.version = 11 : i64} {
  func.func @_conv_stats_kernel(%arg0: i32, %arg1: i32, %arg2: memref<1x8x128xf32, #tpu.memory_space<vmem>>, %arg3: memref<3x8x8xf32, #tpu.memory_space<vmem>>, %arg4: memref<1x1x8x2xf32, #tpu.memory_space<vmem>>, %arg5: memref<1x8x128xf32, #tpu.memory_space<vmem>>, %arg6: memref<1x8x2xf32, #tpu.memory_space<vmem>>) attributes {dimension_semantics = [#tpu.dimension_semantics<parallel>, #tpu.dimension_semantics<arbitrary>], iteration_bounds = array<i64: 2, 4>, scalar_prefetch = 0 : i64, scratch_operands = 0 : i64, tpu.core_type = #tpu.core_type<tc>, window_params = [{transform_indices = @transform_0, window_bounds = array<i64: 1, 8, 128>}, {pipeline_mode = #tpu.pipeline_mode<synchronous>, transform_indices = @transform_1, window_bounds = array<i64: 3, 8, 8>}, {transform_indices = @transform_2, window_bounds = array<i64: 1, 1, 8, 2>}, {transform_indices = @transform_3, window_bounds = array<i64: 1, 8, 128>}, {transform_indices = @transform_4, window_bounds = array<i64: 1, 8, 2>}]} {
    %c0_i32 = arith.constant 0 : i32
    %0 = arith.cmpi eq, %arg1, %c0_i32 : i32
    %1 = arith.extui %0 : i1 to i32
    %c0_i32_0 = arith.constant 0 : i32
    %2 = arith.cmpi ne, %1, %c0_i32_0 : i32
    scf.if %2 {
      %cst_30 = arith.constant 0.000000e+00 : f32
      %50 = vector.broadcast %cst_30 : f32 to vector<1x8x2xf32>
      %c0_31 = arith.constant 0 : index
      %c0_32 = arith.constant 0 : index
      %c0_33 = arith.constant 0 : index
      %51 = vector.load %arg6[%c0_31, %c0_32, %c0_33] : memref<1x8x2xf32, #tpu.memory_space<vmem>>, vector<1x8x2xf32>
      tpu.vector_store %arg6[%c0_31, %c0_32, %c0_33], %50 {strides = array<i32>} : memref<1x8x2xf32, #tpu.memory_space<vmem>>, vector<1x8x2xf32>,
    } else {
    }
    %c0 = arith.constant 0 : index
    %c0_1 = arith.constant 0 : index
    %c0_2 = arith.constant 0 : index
    %3 = vector.load %arg3[%c0, %c0_1, %c0_2] : memref<3x8x8xf32, #tpu.memory_space<vmem>>, vector<1x8x8xf32>
    %4 = vector.shape_cast %3 : vector<1x8x8xf32> to vector<8x8xf32>
    %c1 = arith.constant 1 : index
    %c0_3 = arith.constant 0 : index
    %c0_4 = arith.constant 0 : index
    %5 = vector.load %arg3[%c1, %c0_3, %c0_4] : memref<3x8x8xf32, #tpu.memory_space<vmem>>, vector<1x8x8xf32>
    %6 = vector.shape_cast %5 : vector<1x8x8xf32> to vector<8x8xf32>
    %c2 = arith.constant 2 : index
    %c0_5 = arith.constant 0 : index
    %c0_6 = arith.constant 0 : index
    %7 = vector.load %arg3[%c2, %c0_5, %c0_6] : memref<3x8x8xf32, #tpu.memory_space<vmem>>, vector<1x8x8xf32>
    %8 = vector.shape_cast %7 : vector<1x8x8xf32> to vector<8x8xf32>
    %9 = tpu.iota {dimensions = array<i32: 1>} : vector<8x128xi32>
    %c0_7 = arith.constant 0 : index
    %c0_8 = arith.constant 0 : index
    %c0_9 = arith.constant 0 : index
    %c0_10 = arith.constant 0 : index
    %10 = vector.load %arg4[%c0_7, %c0_8, %c0_9, %c0_10] : memref<1x1x8x2xf32, #tpu.memory_space<vmem>>, vector<1x1x8x2xf32>
    %11 = vector.shape_cast %10 : vector<1x1x8x2xf32> to vector<1x8x2xf32>
    %cst = arith.constant 0.000000e+00 : f32
    %12 = vector.broadcast %cst : f32 to vector<8x2xf32>
    %c0_11 = arith.constant 0 : index
    %c0_12 = arith.constant 0 : index
    %c0_13 = arith.constant 0 : index
    %13 = vector.load %arg2[%c0_11, %c0_12, %c0_13] : memref<1x8x128xf32, #tpu.memory_space<vmem>>, vector<1x8x128xf32>
    %14 = vector.shape_cast %13 : vector<1x8x128xf32> to vector<8x128xf32>
    %15 = vector.extract_strided_slice %11 {offsets = [0, 0, 0], sizes = [1, 8, 1], strides = [1, 1, 1]} : vector<1x8x2xf32> to vector<1x8x1xf32>
    %16 = vector.shape_cast %15 : vector<1x8x1xf32> to vector<8x1xf32>
    %17 = vector.extract_strided_slice %11 {offsets = [0, 0, 1], sizes = [1, 8, 1], strides = [1, 1, 1]} : vector<1x8x2xf32> to vector<1x8x1xf32>
    %18 = vector.shape_cast %17 : vector<1x8x1xf32> to vector<8x1xf32>
    %c0_i32_14 = arith.constant 0 : i32
    %19 = vector.broadcast %c0_i32_14 : i32 to vector<8x128xi32>
    %20 = arith.cmpi eq, %9, %19 : vector<8x128xi32>
    %c1_i32 = arith.constant 1 : i32
    %21 = tpu.dynamic_rotate %14 by %c1_i32 dim 1 : vector<8x128xf32>, i32 -> vector<8x128xf32>
    %22 = vector.shape_cast %16 : vector<8x1xf32> to vector<8x1xf32>
    %23 = vector.broadcast %22 : vector<8x1xf32> to vector<8x128xf32>
    %24 = arith.select %20, %23, %21 : vector<8x128xi1>, vector<8x128xf32>
    %c127_i32 = arith.constant 127 : i32
    %25 = vector.broadcast %c127_i32 : i32 to vector<8x128xi32>
    %26 = arith.cmpi eq, %9, %25 : vector<8x128xi32>
    %c127_i32_15 = arith.constant 127 : i32
    %27 = tpu.dynamic_rotate %14 by %c127_i32_15 dim 1 : vector<8x128xf32>, i32 -> vector<8x128xf32>
    %28 = vector.shape_cast %18 : vector<8x1xf32> to vector<8x1xf32>
    %29 = vector.broadcast %28 : vector<8x1xf32> to vector<8x128xf32>
    %30 = arith.select %26, %29, %27 : vector<8x128xi1>, vector<8x128xf32>
    %cst_16 = arith.constant dense<0.000000e+00> : vector<8x128xf32>
    %31 = tpu.matmul %6, %14, %cst_16 {dimension_numbers = #tpu.dot_dimension_numbers<[1], [0], [0], [1], [0, 0, 1, 1], [], []>} : vector<8x8xf32>, vector<8x128xf32>, vector<8x128xf32> -> vector<8x128xf32>
    %cst_17 = arith.constant dense<0.000000e+00> : vector<8x128xf32>
    %32 = tpu.matmul %4, %24, %cst_17 {dimension_numbers = #tpu.dot_dimension_numbers<[1], [0], [0], [1], [0, 0, 1, 1], [], []>} : vector<8x8xf32>, vector<8x128xf32>, vector<8x128xf32> -> vector<8x128xf32>
    %33 = arith.addf %31, %32 : vector<8x128xf32>
    %cst_18 = arith.constant dense<0.000000e+00> : vector<8x128xf32>
    %34 = tpu.matmul %8, %30, %cst_18 {dimension_numbers = #tpu.dot_dimension_numbers<[1], [0], [0], [1], [0, 0, 1, 1], [], []>} : vector<8x8xf32>, vector<8x128xf32>, vector<8x128xf32> -> vector<8x128xf32>
    %35 = arith.addf %33, %34 : vector<8x128xf32>
    %c0_19 = arith.constant 0 : index
    %c0_20 = arith.constant 0 : index
    %c0_21 = arith.constant 0 : index
    %36 = vector.load %arg5[%c0_19, %c0_20, %c0_21] : memref<1x8x128xf32, #tpu.memory_space<vmem>>, vector<1x8x128xf32>
    %37 = vector.shape_cast %36 : vector<1x8x128xf32> to vector<8x128xf32>
    %38 = vector.shape_cast %35 : vector<8x128xf32> to vector<1x8x128xf32>
    tpu.vector_store %arg5[%c0_19, %c0_20, %c0_21], %38 {strides = array<i32>} : memref<1x8x128xf32, #tpu.memory_space<vmem>>, vector<1x8x128xf32>,
    %cst_22 = arith.constant dense<0.000000e+00> : vector<8xf32>
    %39 = vector.multi_reduction <add>, %35, %cst_22 [1] : vector<8x128xf32> to vector<8xf32>
    %40 = vector.shape_cast %39 : vector<8xf32> to vector<8x1xf32>
    %41 = arith.mulf %35, %35 : vector<8x128xf32>
    %cst_23 = arith.constant dense<0.000000e+00> : vector<8xf32>
    %42 = vector.multi_reduction <add>, %41, %cst_23 [1] : vector<8x128xf32> to vector<8xf32>
    %43 = vector.shape_cast %42 : vector<8xf32> to vector<8x1xf32>
    %44 = tpu.concatenate %40, %43 in 1 : vector<8x1xf32>, vector<8x1xf32> -> vector<8x2xf32>
    %45 = arith.addf %12, %44 : vector<8x2xf32>
    %c0_24 = arith.constant 0 : index
    %c0_25 = arith.constant 0 : index
    %c0_26 = arith.constant 0 : index
    %46 = vector.load %arg6[%c0_24, %c0_25, %c0_26] : memref<1x8x2xf32, #tpu.memory_space<vmem>>, vector<1x8x2xf32>
    %47 = vector.shape_cast %45 : vector<8x2xf32> to vector<1x8x2xf32>
    %48 = arith.addf %46, %47 : vector<1x8x2xf32>
    %c0_27 = arith.constant 0 : index
    %c0_28 = arith.constant 0 : index
    %c0_29 = arith.constant 0 : index
    %49 = vector.load %arg6[%c0_27, %c0_28, %c0_29] : memref<1x8x2xf32, #tpu.memory_space<vmem>>, vector<1x8x2xf32>
    tpu.vector_store %arg6[%c0_27, %c0_28, %c0_29], %48 {strides = array<i32>} : memref<1x8x2xf32, #tpu.memory_space<vmem>>, vector<1x8x2xf32>,
    return
  }
  func.func @transform_0(%arg0: i32, %arg1: i32) -> (i32, i32, i32) {
    %c0_i32 = arith.constant 0 : i32
    %c0_i32_0 = arith.constant 0 : i32
    return %arg0, %c0_i32, %arg1 : i32, i32, i32
  }
  func.func @transform_1(%arg0: i32, %arg1: i32) -> (i32, i32, i32) {
    %c0_i32 = arith.constant 0 : i32
    %c0_i32_0 = arith.constant 0 : i32
    %c0_i32_1 = arith.constant 0 : i32
    %c0_i32_2 = arith.constant 0 : i32
    return %c0_i32, %c0_i32_0, %c0_i32_1 : i32, i32, i32
  }
  func.func @transform_2(%arg0: i32, %arg1: i32) -> (i32, i32, i32, i32) {
    %c0_i32 = arith.constant 0 : i32
    %c0_i32_0 = arith.constant 0 : i32
    %c0_i32_1 = arith.constant 0 : i32
    return %arg1, %arg0, %c0_i32, %c0_i32_0 : i32, i32, i32, i32
  }
  func.func @transform_3(%arg0: i32, %arg1: i32) -> (i32, i32, i32) {
    %c0_i32 = arith.constant 0 : i32
    %c0_i32_0 = arith.constant 0 : i32
    return %arg0, %c0_i32, %arg1 : i32, i32, i32
  }
  func.func @transform_4(%arg0: i32, %arg1: i32) -> (i32, i32, i32) {
    %c0_i32 = arith.constant 0 : i32
    %c0_i32_0 = arith.constant 0 : i32
    %c0_i32_1 = arith.constant 0 : i32
    return %arg0, %c0_i32, %c0_i32_0 : i32, i32, i32
  }
}

module attributes {stable_mosaic.version = 11 : i64} {
  func.func @_bn_relu_conv_stats_kernel(%arg0: i32, %arg1: i32, %arg2: memref<1x8x128xf32, #tpu.memory_space<vmem>>, %arg3: memref<8x1xf32, #tpu.memory_space<vmem>>, %arg4: memref<8x1xf32, #tpu.memory_space<vmem>>, %arg5: memref<3x8x8xf32, #tpu.memory_space<vmem>>, %arg6: memref<1x1x8x2xf32, #tpu.memory_space<vmem>>, %arg7: memref<1x8x128xf32, #tpu.memory_space<vmem>>, %arg8: memref<1x8x2xf32, #tpu.memory_space<vmem>>) attributes {dimension_semantics = [#tpu.dimension_semantics<parallel>, #tpu.dimension_semantics<arbitrary>], iteration_bounds = array<i64: 2, 4>, scalar_prefetch = 0 : i64, scratch_operands = 0 : i64, tpu.core_type = #tpu.core_type<tc>, window_params = [{transform_indices = @transform_0, window_bounds = array<i64: 1, 8, 128>}, {pipeline_mode = #tpu.pipeline_mode<synchronous>, transform_indices = @transform_1, window_bounds = array<i64: 8, 1>}, {pipeline_mode = #tpu.pipeline_mode<synchronous>, transform_indices = @transform_2, window_bounds = array<i64: 8, 1>}, {pipeline_mode = #tpu.pipeline_mode<synchronous>, transform_indices = @transform_3, window_bounds = array<i64: 3, 8, 8>}, {transform_indices = @transform_4, window_bounds = array<i64: 1, 1, 8, 2>}, {transform_indices = @transform_5, window_bounds = array<i64: 1, 8, 128>}, {transform_indices = @transform_6, window_bounds = array<i64: 1, 8, 2>}]} {
    %c0_i32 = arith.constant 0 : i32
    %0 = arith.cmpi eq, %arg1, %c0_i32 : i32
    %1 = arith.extui %0 : i1 to i32
    %c0_i32_0 = arith.constant 0 : i32
    %2 = arith.cmpi ne, %1, %c0_i32_0 : i32
    scf.if %2 {
      %cst_35 = arith.constant 0.000000e+00 : f32
      %58 = vector.broadcast %cst_35 : f32 to vector<1x8x2xf32>
      %c0_36 = arith.constant 0 : index
      %c0_37 = arith.constant 0 : index
      %c0_38 = arith.constant 0 : index
      %59 = vector.load %arg8[%c0_36, %c0_37, %c0_38] : memref<1x8x2xf32, #tpu.memory_space<vmem>>, vector<1x8x2xf32>
      tpu.vector_store %arg8[%c0_36, %c0_37, %c0_38], %58 {strides = array<i32>} : memref<1x8x2xf32, #tpu.memory_space<vmem>>, vector<1x8x2xf32>,
    } else {
    }
    %c0 = arith.constant 0 : index
    %c0_1 = arith.constant 0 : index
    %c0_2 = arith.constant 0 : index
    %3 = vector.load %arg5[%c0, %c0_1, %c0_2] : memref<3x8x8xf32, #tpu.memory_space<vmem>>, vector<1x8x8xf32>
    %4 = vector.shape_cast %3 : vector<1x8x8xf32> to vector<8x8xf32>
    %c1 = arith.constant 1 : index
    %c0_3 = arith.constant 0 : index
    %c0_4 = arith.constant 0 : index
    %5 = vector.load %arg5[%c1, %c0_3, %c0_4] : memref<3x8x8xf32, #tpu.memory_space<vmem>>, vector<1x8x8xf32>
    %6 = vector.shape_cast %5 : vector<1x8x8xf32> to vector<8x8xf32>
    %c2 = arith.constant 2 : index
    %c0_5 = arith.constant 0 : index
    %c0_6 = arith.constant 0 : index
    %7 = vector.load %arg5[%c2, %c0_5, %c0_6] : memref<3x8x8xf32, #tpu.memory_space<vmem>>, vector<1x8x8xf32>
    %8 = vector.shape_cast %7 : vector<1x8x8xf32> to vector<8x8xf32>
    %9 = tpu.iota {dimensions = array<i32: 1>} : vector<8x128xi32>
    %c0_7 = arith.constant 0 : index
    %c0_8 = arith.constant 0 : index
    %10 = vector.load %arg3[%c0_7, %c0_8] : memref<8x1xf32, #tpu.memory_space<vmem>>, vector<8x1xf32>
    %c0_9 = arith.constant 0 : index
    %c0_10 = arith.constant 0 : index
    %11 = vector.load %arg4[%c0_9, %c0_10] : memref<8x1xf32, #tpu.memory_space<vmem>>, vector<8x1xf32>
    %c0_11 = arith.constant 0 : index
    %c0_12 = arith.constant 0 : index
    %c0_13 = arith.constant 0 : index
    %c0_14 = arith.constant 0 : index
    %12 = vector.load %arg6[%c0_11, %c0_12, %c0_13, %c0_14] : memref<1x1x8x2xf32, #tpu.memory_space<vmem>>, vector<1x1x8x2xf32>
    %13 = vector.shape_cast %12 : vector<1x1x8x2xf32> to vector<1x8x2xf32>
    %cst = arith.constant 0.000000e+00 : f32
    %14 = vector.broadcast %cst : f32 to vector<8x2xf32>
    %c0_15 = arith.constant 0 : index
    %c0_16 = arith.constant 0 : index
    %c0_17 = arith.constant 0 : index
    %15 = vector.load %arg2[%c0_15, %c0_16, %c0_17] : memref<1x8x128xf32, #tpu.memory_space<vmem>>, vector<1x8x128xf32>
    %16 = vector.shape_cast %15 : vector<1x8x128xf32> to vector<8x128xf32>
    %17 = vector.broadcast %10 : vector<8x1xf32> to vector<8x128xf32>
    %18 = arith.mulf %16, %17 : vector<8x128xf32>
    %19 = vector.broadcast %11 : vector<8x1xf32> to vector<8x128xf32>
    %20 = arith.addf %18, %19 : vector<8x128xf32>
    %cst_18 = arith.constant 0.000000e+00 : f32
    %21 = vector.broadcast %cst_18 : f32 to vector<8x128xf32>
    %22 = arith.maximumf %20, %21 : vector<8x128xf32>
    %23 = vector.extract_strided_slice %13 {offsets = [0, 0, 0], sizes = [1, 8, 1], strides = [1, 1, 1]} : vector<1x8x2xf32> to vector<1x8x1xf32>
    %24 = vector.shape_cast %23 : vector<1x8x1xf32> to vector<8x1xf32>
    %25 = vector.extract_strided_slice %13 {offsets = [0, 0, 1], sizes = [1, 8, 1], strides = [1, 1, 1]} : vector<1x8x2xf32> to vector<1x8x1xf32>
    %26 = vector.shape_cast %25 : vector<1x8x1xf32> to vector<8x1xf32>
    %c0_i32_19 = arith.constant 0 : i32
    %27 = vector.broadcast %c0_i32_19 : i32 to vector<8x128xi32>
    %28 = arith.cmpi eq, %9, %27 : vector<8x128xi32>
    %c1_i32 = arith.constant 1 : i32
    %29 = tpu.dynamic_rotate %22 by %c1_i32 dim 1 : vector<8x128xf32>, i32 -> vector<8x128xf32>
    %30 = vector.shape_cast %24 : vector<8x1xf32> to vector<8x1xf32>
    %31 = vector.broadcast %30 : vector<8x1xf32> to vector<8x128xf32>
    %32 = arith.select %28, %31, %29 : vector<8x128xi1>, vector<8x128xf32>
    %c127_i32 = arith.constant 127 : i32
    %33 = vector.broadcast %c127_i32 : i32 to vector<8x128xi32>
    %34 = arith.cmpi eq, %9, %33 : vector<8x128xi32>
    %c127_i32_20 = arith.constant 127 : i32
    %35 = tpu.dynamic_rotate %22 by %c127_i32_20 dim 1 : vector<8x128xf32>, i32 -> vector<8x128xf32>
    %36 = vector.shape_cast %26 : vector<8x1xf32> to vector<8x1xf32>
    %37 = vector.broadcast %36 : vector<8x1xf32> to vector<8x128xf32>
    %38 = arith.select %34, %37, %35 : vector<8x128xi1>, vector<8x128xf32>
    %cst_21 = arith.constant dense<0.000000e+00> : vector<8x128xf32>
    %39 = tpu.matmul %6, %22, %cst_21 {dimension_numbers = #tpu.dot_dimension_numbers<[1], [0], [0], [1], [0, 0, 1, 1], [], []>} : vector<8x8xf32>, vector<8x128xf32>, vector<8x128xf32> -> vector<8x128xf32>
    %cst_22 = arith.constant dense<0.000000e+00> : vector<8x128xf32>
    %40 = tpu.matmul %4, %32, %cst_22 {dimension_numbers = #tpu.dot_dimension_numbers<[1], [0], [0], [1], [0, 0, 1, 1], [], []>} : vector<8x8xf32>, vector<8x128xf32>, vector<8x128xf32> -> vector<8x128xf32>
    %41 = arith.addf %39, %40 : vector<8x128xf32>
    %cst_23 = arith.constant dense<0.000000e+00> : vector<8x128xf32>
    %42 = tpu.matmul %8, %38, %cst_23 {dimension_numbers = #tpu.dot_dimension_numbers<[1], [0], [0], [1], [0, 0, 1, 1], [], []>} : vector<8x8xf32>, vector<8x128xf32>, vector<8x128xf32> -> vector<8x128xf32>
    %43 = arith.addf %41, %42 : vector<8x128xf32>
    %c0_24 = arith.constant 0 : index
    %c0_25 = arith.constant 0 : index
    %c0_26 = arith.constant 0 : index
    %44 = vector.load %arg7[%c0_24, %c0_25, %c0_26] : memref<1x8x128xf32, #tpu.memory_space<vmem>>, vector<1x8x128xf32>
    %45 = vector.shape_cast %44 : vector<1x8x128xf32> to vector<8x128xf32>
    %46 = vector.shape_cast %43 : vector<8x128xf32> to vector<1x8x128xf32>
    tpu.vector_store %arg7[%c0_24, %c0_25, %c0_26], %46 {strides = array<i32>} : memref<1x8x128xf32, #tpu.memory_space<vmem>>, vector<1x8x128xf32>,
    %cst_27 = arith.constant dense<0.000000e+00> : vector<8xf32>
    %47 = vector.multi_reduction <add>, %43, %cst_27 [1] : vector<8x128xf32> to vector<8xf32>
    %48 = vector.shape_cast %47 : vector<8xf32> to vector<8x1xf32>
    %49 = arith.mulf %43, %43 : vector<8x128xf32>
    %cst_28 = arith.constant dense<0.000000e+00> : vector<8xf32>
    %50 = vector.multi_reduction <add>, %49, %cst_28 [1] : vector<8x128xf32> to vector<8xf32>
    %51 = vector.shape_cast %50 : vector<8xf32> to vector<8x1xf32>
    %52 = tpu.concatenate %48, %51 in 1 : vector<8x1xf32>, vector<8x1xf32> -> vector<8x2xf32>
    %53 = arith.addf %14, %52 : vector<8x2xf32>
    %c0_29 = arith.constant 0 : index
    %c0_30 = arith.constant 0 : index
    %c0_31 = arith.constant 0 : index
    %54 = vector.load %arg8[%c0_29, %c0_30, %c0_31] : memref<1x8x2xf32, #tpu.memory_space<vmem>>, vector<1x8x2xf32>
    %55 = vector.shape_cast %53 : vector<8x2xf32> to vector<1x8x2xf32>
    %56 = arith.addf %54, %55 : vector<1x8x2xf32>
    %c0_32 = arith.constant 0 : index
    %c0_33 = arith.constant 0 : index
    %c0_34 = arith.constant 0 : index
    %57 = vector.load %arg8[%c0_32, %c0_33, %c0_34] : memref<1x8x2xf32, #tpu.memory_space<vmem>>, vector<1x8x2xf32>
    tpu.vector_store %arg8[%c0_32, %c0_33, %c0_34], %56 {strides = array<i32>} : memref<1x8x2xf32, #tpu.memory_space<vmem>>, vector<1x8x2xf32>,
    return
  }
  func.func @transform_0(%arg0: i32, %arg1: i32) -> (i32, i32, i32) {
    %c0_i32 = arith.constant 0 : i32
    %c0_i32_0 = arith.constant 0 : i32
    return %arg0, %c0_i32, %arg1 : i32, i32, i32
  }
  func.func @transform_1(%arg0: i32, %arg1: i32) -> (i32, i32) {
    %c0_i32 = arith.constant 0 : i32
    %c0_i32_0 = arith.constant 0 : i32
    %c0_i32_1 = arith.constant 0 : i32
    return %c0_i32, %c0_i32_0 : i32, i32
  }
  func.func @transform_2(%arg0: i32, %arg1: i32) -> (i32, i32) {
    %c0_i32 = arith.constant 0 : i32
    %c0_i32_0 = arith.constant 0 : i32
    %c0_i32_1 = arith.constant 0 : i32
    return %c0_i32, %c0_i32_0 : i32, i32
  }
  func.func @transform_3(%arg0: i32, %arg1: i32) -> (i32, i32, i32) {
    %c0_i32 = arith.constant 0 : i32
    %c0_i32_0 = arith.constant 0 : i32
    %c0_i32_1 = arith.constant 0 : i32
    %c0_i32_2 = arith.constant 0 : i32
    return %c0_i32, %c0_i32_0, %c0_i32_1 : i32, i32, i32
  }
  func.func @transform_4(%arg0: i32, %arg1: i32) -> (i32, i32, i32, i32) {
    %c0_i32 = arith.constant 0 : i32
    %c0_i32_0 = arith.constant 0 : i32
    %c0_i32_1 = arith.constant 0 : i32
    return %arg1, %arg0, %c0_i32, %c0_i32_0 : i32, i32, i32, i32
  }
  func.func @transform_5(%arg0: i32, %arg1: i32) -> (i32, i32, i32) {
    %c0_i32 = arith.constant 0 : i32
    %c0_i32_0 = arith.constant 0 : i32
    return %arg0, %c0_i32, %arg1 : i32, i32, i32
  }
  func.func @transform_6(%arg0: i32, %arg1: i32) -> (i32, i32, i32) {
    %c0_i32 = arith.constant 0 : i32
    %c0_i32_0 = arith.constant 0 : i32
    %c0_i32_1 = arith.constant 0 : i32
    return %arg0, %c0_i32, %c0_i32_0 : i32, i32, i32
  }
}

module attributes {stable_mosaic.version = 11 : i64} {
  func.func @_bn_relu_residual_kernel(%arg0: i32, %arg1: i32, %arg2: memref<1x8x128xf32, #tpu.memory_space<vmem>>, %arg3: memref<8x1xf32, #tpu.memory_space<vmem>>, %arg4: memref<8x1xf32, #tpu.memory_space<vmem>>, %arg5: memref<1x8x128xf32, #tpu.memory_space<vmem>>, %arg6: memref<1x8x128xf32, #tpu.memory_space<vmem>>) attributes {dimension_semantics = [#tpu.dimension_semantics<parallel>, #tpu.dimension_semantics<parallel>], iteration_bounds = array<i64: 2, 4>, scalar_prefetch = 0 : i64, scratch_operands = 0 : i64, tpu.core_type = #tpu.core_type<tc>, window_params = [{transform_indices = @transform_0, window_bounds = array<i64: 1, 8, 128>}, {pipeline_mode = #tpu.pipeline_mode<synchronous>, transform_indices = @transform_1, window_bounds = array<i64: 8, 1>}, {pipeline_mode = #tpu.pipeline_mode<synchronous>, transform_indices = @transform_2, window_bounds = array<i64: 8, 1>}, {transform_indices = @transform_3, window_bounds = array<i64: 1, 8, 128>}, {transform_indices = @transform_4, window_bounds = array<i64: 1, 8, 128>}]} {
    %c0 = arith.constant 0 : index
    %c0_0 = arith.constant 0 : index
    %c0_1 = arith.constant 0 : index
    %0 = vector.load %arg2[%c0, %c0_0, %c0_1] : memref<1x8x128xf32, #tpu.memory_space<vmem>>, vector<1x8x128xf32>
    %c0_2 = arith.constant 0 : index
    %c0_3 = arith.constant 0 : index
    %1 = vector.load %arg3[%c0_2, %c0_3] : memref<8x1xf32, #tpu.memory_space<vmem>>, vector<8x1xf32>
    %2 = vector.shape_cast %1 : vector<8x1xf32> to vector<1x8x1xf32>
    %3 = vector.broadcast %2 : vector<1x8x1xf32> to vector<1x8x128xf32>
    %4 = arith.mulf %0, %3 : vector<1x8x128xf32>
    %c0_4 = arith.constant 0 : index
    %c0_5 = arith.constant 0 : index
    %5 = vector.load %arg4[%c0_4, %c0_5] : memref<8x1xf32, #tpu.memory_space<vmem>>, vector<8x1xf32>
    %6 = vector.shape_cast %5 : vector<8x1xf32> to vector<1x8x1xf32>
    %7 = vector.broadcast %6 : vector<1x8x1xf32> to vector<1x8x128xf32>
    %8 = arith.addf %4, %7 : vector<1x8x128xf32>
    %cst = arith.constant 0.000000e+00 : f32
    %9 = vector.broadcast %cst : f32 to vector<1x8x128xf32>
    %10 = arith.maximumf %8, %9 : vector<1x8x128xf32>
    %c0_6 = arith.constant 0 : index
    %c0_7 = arith.constant 0 : index
    %c0_8 = arith.constant 0 : index
    %11 = vector.load %arg5[%c0_6, %c0_7, %c0_8] : memref<1x8x128xf32, #tpu.memory_space<vmem>>, vector<1x8x128xf32>
    %12 = arith.addf %10, %11 : vector<1x8x128xf32>
    %c0_9 = arith.constant 0 : index
    %c0_10 = arith.constant 0 : index
    %c0_11 = arith.constant 0 : index
    %13 = vector.load %arg6[%c0_9, %c0_10, %c0_11] : memref<1x8x128xf32, #tpu.memory_space<vmem>>, vector<1x8x128xf32>
    tpu.vector_store %arg6[%c0_9, %c0_10, %c0_11], %12 {strides = array<i32>} : memref<1x8x128xf32, #tpu.memory_space<vmem>>, vector<1x8x128xf32>,
    return
  }
  func.func @transform_0(%arg0: i32, %arg1: i32) -> (i32, i32, i32) {
    %c0_i32 = arith.constant 0 : i32
    %c0_i32_0 = arith.constant 0 : i32
    return %arg0, %c0_i32, %arg1 : i32, i32, i32
  }
  func.func @transform_1(%arg0: i32, %arg1: i32) -> (i32, i32) {
    %c0_i32 = arith.constant 0 : i32
    %c0_i32_0 = arith.constant 0 : i32
    %c0_i32_1 = arith.constant 0 : i32
    return %c0_i32, %c0_i32_0 : i32, i32
  }
  func.func @transform_2(%arg0: i32, %arg1: i32) -> (i32, i32) {
    %c0_i32 = arith.constant 0 : i32
    %c0_i32_0 = arith.constant 0 : i32
    %c0_i32_1 = arith.constant 0 : i32
    return %c0_i32, %c0_i32_0 : i32, i32
  }
  func.func @transform_3(%arg0: i32, %arg1: i32) -> (i32, i32, i32) {
    %c0_i32 = arith.constant 0 : i32
    %c0_i32_0 = arith.constant 0 : i32
    return %arg0, %c0_i32, %arg1 : i32, i32, i32
  }
  func.func @transform_4(%arg0: i32, %arg1: i32) -> (i32, i32, i32) {
    %c0_i32 = arith.constant 0 : i32
    %c0_i32_0 = arith.constant 0 : i32
    return %arg0, %c0_i32, %arg1 : i32, i32, i32
  }
}

</mosaic_0001>

<llo_original>
// kernel: resblock_forward.5
$region0: #{resblock_forward.5}
  #allocation0 [shape = 'u32[]', space=smem, size = 0x4, offset = 0x4, fixed_abs, tag = 'smem constant byte address 0x4 - core index']
  #allocation1 [shape = 'u32[144,128]{1,0:T(1,128)}', space=vmem, size = 0x12000, scoped, tag = 'internal scratch']
  %s0 = inlined_call_operand.hbm [shape: f32[2,8,512], index: 0, kind: input, shape index: {}, may-alias: {0,4}]
  %s1 = inlined_call_operand.vmem [shape: f32[8,1], index: 1, kind: input, shape index: {}]
  %s2 = inlined_call_operand.vmem [shape: f32[8,1], index: 2, kind: input, shape index: {}]
  %s3 = inlined_call_operand.vmem [shape: f32[2,8,512], index: 3, kind: input, shape index: {}]
  %s4 = inlined_call_operand.hbm [shape: f32[2,8,512], index: 4, kind: output, shape index: {}, may-alias: {0,4}]
  %s5 = sld [smem:[#allocation0]]
  $region53: #{resblock_forward.5} parent=0
    _
  %s7 = ssub.s32 1, %s5
  %s8 = scalar_select 0, %s7, %s5
  $region1: #{resblock_forward.5} parent=0
    #allocation2 [shape = 'u8[8192]{0}', space=vmem, size = 0x2000, scoped, tag = 'input window, operand 0']
    #allocation3 [shape = 's32[2]{0}', space=sflag, size = 0x8, scoped, tag = 'scoped memory for resblock_forward.5']
    #allocation4 [shape = 's32[2]{0}', space=sflag, size = 0x8, scoped, tag = 'scoped memory for resblock_forward.5']
    #allocation5 [shape = 'u8[8192]{0}', space=vmem, size = 0x2000, scoped, tag = 'output window, operand 0']
    %9 = vsyncpa [#allocation3], 0
    %s10 = scalar_lea.sflag [#allocation3], 1
    %11 = vsyncpa %s10, 0
    %12 = vsyncpa [#allocation4], 0
    %s13 = scalar_lea.sflag [#allocation4], 1
    %14 = vsyncpa %s13, 0
    loop: start=0, step=1, limit=10
    $region2: #{resblock_forward.5} parent=1 // loop_pre_header
      _
    $region3: #{resblock_forward.5} parent=1 // loop_header
      %s16 = sphi 0, %s20
      %p17 = scmp.ge.s32.totalorder %s16, 10
      %s23 = sphi 0, %s35
      %s24 = sphi 0, %s31
      %s25 = sphi 0, %s23
      %s26 = sphi 0, %s24
      %s27 = sphi 0, %s25
      %s28 = sphi 0, %s26
      %s40 = sphi 0, %s42
      %s43 = sphi 0, %s40
      %s44 = sphi 0, %s43
      %s60 = sphi 0, %s44
      %s64 = sphi 0, %s64
      %s66 = sphi 0, %s64
      %s67 = sphi 0, %s66
      %s81 = sphi 0, %s67
      %s85 = sphi 0, %s85
      %s87 = sphi 0, %s85
      %s88 = sphi 0, %s87
      %s102 = sphi 0, %s88
      %s110 = sphi 0, %s112
      %s113 = sphi 0, %s110
      %s114 = sphi 0, %s113
      %s130 = sphi 0, %s114
      %s138 = sphi 0, %s140
      %s141 = sphi 0, %s138
      %s142 = sphi 0, %s141
      %s158 = sphi 0, %s142
    $region4: #{resblock_forward.5} parent=1 // loop_header_branch
      %19 = sbr.rel (%p17) target = $region8
    $region5: #{resblock_forward.5} parent=1 // loop_body
      %s21 = ssub.s32 %s16, 1
      %s22 = ssub.s32 %s16, 2
      %s29 = sadd.s32 1, %s24
      %p30 = scmp.ge.s32.totalorder %s29, 4
      %s31 = scalar_select %p30, 0, %s29
      %s32 = sadd.s32 1, %s23
      %s33 = scalar_select %p30, %s32, %s23
      %p34 = scmp.ge.s32.totalorder %s33, 2
      %s35 = scalar_select %p34, 0, %s33
      %s36 = ssub.s32 %s23, %s35
      %s37 = ssub.s32 %s24, %s31
      %s38 = sor.u32 %s36, %s37
      %p39 = scmp.eq.s32.totalorder %s38, 0
      %s41 = sadd.s32 %s40, 1
      %s42 = scalar_select %p39, %s40, %s41
      %p45 = pneg %p39
      %p46 = scmp.eq.s32.totalorder %s16, 7
      %p47 = por %p45, %p46
      %p48 = scmp.ne.s32.totalorder %s40, %s43
      %p49 = scmp.eq.s32.totalorder %s16, 0
      %p50 = por %p48, %p49
      %p51 = scmp.ne.s32.totalorder %s40, %s43
      %p52 = scmp.eq.s32.totalorder %s21, 7
      %p53 = por %p51, %p52
      %p54 = scmp.ne.s32.totalorder %s43, %s44
      %p55 = scmp.eq.s32.totalorder %s21, 0
      %p56 = por %p54, %p55
      %p57 = scmp.ne.s32.totalorder %s43, %s44
      %p58 = scmp.eq.s32.totalorder %s22, 7
      %p59 = por %p57, %p58
      %p61 = scmp.ne.s32.totalorder %s44, %s60
      %p62 = scmp.eq.s32.totalorder %s22, 0
      %p63 = por %p61, %p62
      %s65 = sadd.s32 %s64, 1
      %p68 = scmp.eq.s32.totalorder %s16, 7
      %p69 = scmp.ne.s32.totalorder %s64, %s66
      %p70 = scmp.eq.s32.totalorder %s16, 0
      %p71 = por %p69, %p70
      %p72 = scmp.ne.s32.totalorder %s64, %s66
      %p73 = scmp.eq.s32.totalorder %s21, 7
      %p74 = por %p72, %p73
      %p75 = scmp.ne.s32.totalorder %s66, %s67
      %p76 = scmp.eq.s32.totalorder %s21, 0
      %p77 = por %p75, %p76
      %p78 = scmp.ne.s32.totalorder %s66, %s67
      %p79 = scmp.eq.s32.totalorder %s22, 7
      %p80 = por %p78, %p79
      %p82 = scmp.ne.s32.totalorder %s67, %s81
      %p83 = scmp.eq.s32.totalorder %s22, 0
      %p84 = por %p82, %p83
      %s86 = sadd.s32 %s85, 1
      %p89 = scmp.eq.s32.totalorder %s16, 7
      %p90 = scmp.ne.s32.totalorder %s85, %s87
      %p91 = scmp.eq.s32.totalorder %s16, 0
      %p92 = por %p90, %p91
      %p93 = scmp.ne.s32.totalorder %s85, %s87
      %p94 = scmp.eq.s32.totalorder %s21, 7
      %p95 = por %p93, %p94
      %p96 = scmp.ne.s32.totalorder %s87, %s88
      %p97 = scmp.eq.s32.totalorder %s21, 0
      %p98 = por %p96, %p97
      %p99 = scmp.ne.s32.totalorder %s87, %s88
      %p100 = scmp.eq.s32.totalorder %s22, 7
      %p101 = por %p99, %p100
      %p103 = scmp.ne.s32.totalorder %s88, %s102
      %p104 = scmp.eq.s32.totalorder %s22, 0
      %p105 = por %p103, %p104
      %s106 = ssub.s32 %s23, %s35
      %s107 = ssub.s32 %s24, %s31
      %s108 = sor.u32 %s106, %s107
      %p109 = scmp.eq.s32.totalorder %s108, 0
      %s111 = sadd.s32 %s110, 1
      %s112 = scalar_select %p109, %s110, %s111
      %p115 = pneg %p109
      %p116 = scmp.eq.s32.totalorder %s16, 7
      %p117 = por %p115, %p116
      %p118 = scmp.ne.s32.totalorder %s110, %s113
      %p119 = scmp.eq.s32.totalorder %s16, 0
      %p120 = por %p118, %p119
      %p121 = scmp.ne.s32.totalorder %s110, %s113
      %p122 = scmp.eq.s32.totalorder %s21, 7
      %p123 = por %p121, %p122
      %p124 = scmp.ne.s32.totalorder %s113, %s114
      %p125 = scmp.eq.s32.totalorder %s21, 0
      %p126 = por %p124, %p125
      %p127 = scmp.ne.s32.totalorder %s113, %s114
      %p128 = scmp.eq.s32.totalorder %s22, 7
      %p129 = por %p127, %p128
      %p131 = scmp.ne.s32.totalorder %s114, %s130
      %p132 = scmp.eq.s32.totalorder %s22, 0
      %p133 = por %p131, %p132
      %s134 = ssub.s32 %s23, %s35
      %s135 = ssub.s32 %s24, %s31
      %s136 = sor.u32 %s134, %s135
      %p137 = scmp.eq.s32.totalorder %s136, 0
      %s139 = sadd.s32 %s138, 1
      %s140 = scalar_select %p137, %s138, %s139
      %p143 = pneg %p137
      %p144 = scmp.eq.s32.totalorder %s16, 7
      %p145 = por %p143, %p144
      %p146 = scmp.ne.s32.totalorder %s138, %s141
      %p147 = scmp.eq.s32.totalorder %s16, 0
      %p148 = por %p146, %p147
      %p149 = scmp.ne.s32.totalorder %s138, %s141
      %p150 = scmp.eq.s32.totalorder %s21, 7
      %p151 = por %p149, %p150
      %p152 = scmp.ne.s32.totalorder %s141, %s142
      %p153 = scmp.eq.s32.totalorder %s21, 0
      %p154 = por %p152, %p153
      %p155 = scmp.ne.s32.totalorder %s141, %s142
      %p156 = scmp.eq.s32.totalorder %s22, 7
      %p157 = por %p155, %p156
      %p159 = scmp.ne.s32.totalorder %s142, %s158
      %p160 = scmp.eq.s32.totalorder %s22, 0
      %p161 = por %p159, %p160
      %p162 = scmp.le.s32.totalorder 1, %s16
      %p163 = scmp.lt.s32.totalorder %s16, 9
      %p164 = pnand %p162, %p163
      %p165 = pneg %p164
      // Predicated region
      $region9: #{resblock_forward.5} parent=5 // pred_check
        _
      $region10: #{resblock_forward.5} parent=5 // pred_check_branch
        %167 = sbr.rel (%p164) target = $region12
      $region11: #{resblock_forward.5} parent=5 // pred_region
        %s168 = ssub.s32 %s16, 1
        // Predicated region
        $region13: #{resblock_forward.5} parent=11 // pred_check
          %p169 = pneg %p77
        $region14: #{resblock_forward.5} parent=11 // pred_check_branch
          %171 = sbr.rel (%p169) target = $region16
        $region15: #{resblock_forward.5} parent=11 // pred_region
          _
        $region16: #{resblock_forward.5} parent=11 // pred_fallthru
          _
        // Predicated region
        $region17: #{resblock_forward.5} parent=11 // pred_check
          %p172 = pneg %p98
        $region18: #{resblock_forward.5} parent=11 // pred_check_branch
          %174 = sbr.rel (%p172) target = $region20
        $region19: #{resblock_forward.5} parent=11 // pred_region
          _
        $region20: #{resblock_forward.5} parent=11 // pred_fallthru
          _
      $region12: #{resblock_forward.5} parent=5 // pred_fallthru
        _
      %p175 = scmp.lt.s32.totalorder %s16, 8
      // Predicated region
      $region21: #{resblock_forward.5} parent=5 // pred_check
        %p176 = pneg %p175
      $region22: #{resblock_forward.5} parent=5 // pred_check_branch
        %178 = sbr.rel (%p176) target = $region24
      $region23: #{resblock_forward.5} parent=5 // pred_region
        // Predicated region
        $region25: #{resblock_forward.5} parent=23 // pred_check
          %p179 = pneg %p50
        $region26: #{resblock_forward.5} parent=23 // pred_check_branch
          %181 = sbr.rel (%p179) target = $region28
        $region27: #{resblock_forward.5} parent=23 // pred_region
          %s182 = sand.u32 %s40, 1
          %s183 = scalar_lea.sflag [#allocation3], %s182
          %s184 = sand.u32 %s40, 1
          %s185 = smul.addr %s184, 8
          %s186 = scalar_lea.vmem [#allocation2], %s185
          %s188 = ssub.s32 128, 128
          %189 = vsyncadd %s183, %s188
          %s190 = smul.addr %s23, 4
          %s191 = sadd.s32 %s24, %s190
          %s192 = smul.addr %s191, 128
          %s193 = scalar_lea.hbm %s0, %s192
          %s195 = sshll.u32 %s186, 4
          %s196 = int_to_ptr.vmem [resolvable:$true] %s195
          %198 = dma.hbm_to_vmem [thread:$0]  %s193, 128, %s196, %s183
        $region28: #{resblock_forward.5} parent=23 // pred_fallthru
          _
        // Predicated region
        $region29: #{resblock_forward.5} parent=23 // pred_check
          %p199 = pneg %p120
        $region30: #{resblock_forward.5} parent=23 // pred_check_branch
          %201 = sbr.rel (%p199) target = $region32
        $region31: #{resblock_forward.5} parent=23 // pred_region
          %p202 = scmp.lt.s32.totalorder %s23, 1
          %s203 = scalar_select %p202, %s23, 1
          %p204 = scmp.lt.s32.totalorder %s24, 3
          %s205 = scalar_select %p204, %s24, 3
          %s206 = smul.addr %s203, 4
          %s207 = sadd.s32 %s205, %s206
          %s208 = smul.addr %s207, 8
          %s209 = scalar_lea.vmem %s3, %s208
        $region32: #{resblock_forward.5} parent=23 // pred_fallthru
          _
      $region24: #{resblock_forward.5} parent=5 // pred_fallthru
        _
      %p210 = scmp.le.s32.totalorder 1, %s16
      %p211 = scmp.lt.s32.totalorder %s16, 9
      %p212 = pnand %p210, %p211
      %p213 = pneg %p212
      // Predicated region
      $region33: #{resblock_forward.5} parent=5 // pred_check
        _
      $region34: #{resblock_forward.5} parent=5 // pred_check_branch
        %215 = sbr.rel (%p212) target = $region36
      $region35: #{resblock_forward.5} parent=5 // pred_region
        %s216 = ssub.s32 %s16, 1
        %s217 = sand.u32 %s43, 1
        %s218 = scalar_lea.sflag [#allocation3], %s217
        %s219 = sand.u32 %s43, 1
        %s220 = smul.addr %s219, 8
        %s221 = scalar_lea.vmem [#allocation2], %s220
        // Predicated region
        $region37: #{resblock_forward.5} parent=35 // pred_check
          %p222 = pneg %p56
        $region38: #{resblock_forward.5} parent=35 // pred_check_branch
          %224 = sbr.rel (%p222) target = $region40
        $region39: #{resblock_forward.5} parent=35 // pred_region
          %225 = dma.done %s218, 128
        $region40: #{resblock_forward.5} parent=35 // pred_fallthru
          _
        %s226 = sand.u32 %s43, 1
        %s227 = scalar_lea.sflag [#allocation3], %s226
        %s228 = sand.u32 %s43, 1
        %s229 = smul.addr %s228, 8
        %s230 = scalar_lea.vmem [#allocation2], %s229
        %p231 = pneg %p56
        %p232 = pneg %p53
        %p233 = pneg %p77
        %p234 = pneg %p74
        %p235 = pneg %p98
        %p236 = pneg %p95
        %p237 = scmp.lt.s32.totalorder %s25, 1
        %s238 = scalar_select %p237, %s25, 1
        %p239 = scmp.lt.s32.totalorder %s26, 3
        %s240 = scalar_select %p239, %s26, 3
        %s241 = smul.addr %s238, 4
        %s242 = sadd.s32 %s240, %s241
        %s243 = smul.addr %s242, 8
        %s244 = scalar_lea.vmem %s3, %s243
        %p245 = pneg %p126
        %p246 = pneg %p123
        %p247 = pneg %p154
        %p248 = pneg %p151
        %s249 = sand.u32 %s141, 1
        %s250 = scalar_lea.sflag [#allocation4], %s249
        %s251 = sand.u32 %s141, 1
        %s252 = smul.addr %s251, 8
        %s253 = scalar_lea.vmem [#allocation5], %s252
        %p254 = scmp.lt.s32.totalorder %s25, 1
        %s255 = scalar_select %p254, %s25, 1
        %p256 = scmp.lt.s32.totalorder %s26, 3
        %s257 = scalar_select %p256, %s26, 3
        %s258 = smul.addr %s255, 4
        %s259 = sadd.s32 %s257, %s258
        %s260 = smul.addr %s259, 8
        %s261 = scalar_lea.vmem %s3, %s260
        %v262 = vld [vmem:[%s221] sm:$0xff]
        %v263 = vld [vmem:[%s1] sm:$0xff]
        %265 = vset.pattern.permute.xlu0 0
        %266 = vperm.xlu0 %265, %v263
        %v267 = vpop.permute.xlu0 %266
        %v269 = vmul.f32 %v262, %v267
        %v270 = vld [vmem:[%s2] sm:$0xff]
        %272 = vset.pattern.permute.xlu0 0
        %273 = vperm.xlu0 %272, %v270
        %v274 = vpop.permute.xlu0 %273
        %v276 = vadd.f32 %v269, %v274
        %v277 = vmax.f32 %v276, 0.0
        %v278 = vld [vmem:[%s261] sm:$0xff]
        %v279 = vadd.f32 %v277, %v278
        %280 = vst [vmem:[%s253] sm:$0xff] %v279
        %s281 = sand.u32 %s141, 1
        %s282 = scalar_lea.sflag [#allocation4], %s281
        %s283 = sand.u32 %s141, 1
        %s284 = smul.addr %s283, 8
        %s285 = scalar_lea.vmem [#allocation5], %s284
        // Predicated region
        $region41: #{resblock_forward.5} parent=35 // pred_check
          %p286 = pneg %p151
        $region42: #{resblock_forward.5} parent=35 // pred_check_branch
          %288 = sbr.rel (%p286) target = $region44
        $region43: #{resblock_forward.5} parent=35 // pred_region
          %s290 = ssub.s32 128, 128
          %291 = vsyncadd %s282, %s290
          %s292 = smul.addr %s25, 4
          %s293 = sadd.s32 %s26, %s292
          %s294 = smul.addr %s293, 128
          %s295 = scalar_lea.hbm %s4, %s294
          %s297 = sshll.u32 %s285, 4
          %s298 = int_to_ptr.vmem [resolvable:$true] %s297
          %300 = dma.vmem_to_hbm [thread:$0]  %s298, 128, %s295, %s282
        $region44: #{resblock_forward.5} parent=35 // pred_fallthru
          _
      $region36: #{resblock_forward.5} parent=5 // pred_fallthru
        _
      %p301 = scmp.le.s32.totalorder 2, %s16
      // Predicated region
      $region45: #{resblock_forward.5} parent=5 // pred_check
        %p302 = pneg %p301
      $region46: #{resblock_forward.5} parent=5 // pred_check_branch
        %304 = sbr.rel (%p302) target = $region48
      $region47: #{resblock_forward.5} parent=5 // pred_region
        %s305 = ssub.s32 %s16, 2
        // Predicated region
        $region49: #{resblock_forward.5} parent=47 // pred_check
          %p306 = pneg %p157
        $region50: #{resblock_forward.5} parent=47 // pred_check_branch
          %308 = sbr.rel (%p306) target = $region52
        $region51: #{resblock_forward.5} parent=47 // pred_region
          %s309 = sand.u32 %s142, 1
          %s310 = scalar_lea.sflag [#allocation4], %s309
          %s311 = sand.u32 %s142, 1
          %s312 = smul.addr %s311, 8
          %s313 = scalar_lea.vmem [#allocation5], %s312
          %314 = dma.done %s310, 128
        $region52: #{resblock_forward.5} parent=47 // pred_fallthru
          _
      $region48: #{resblock_forward.5} parent=5 // pred_fallthru
        _
    $region6: #{resblock_forward.5} parent=1 // loop_footer
      %s20 = sadd.s32 1, %s16
    $region7: #{resblock_forward.5} parent=1 // loop_footer_branch
      %15 = sbr.rel target = $region3
    $region8: #{resblock_forward.5} parent=1 // loop_exit
      _
    %315 = vsyncpa [#allocation3], 1
    %s316 = scalar_lea.sflag [#allocation3], 1
    %317 = vsyncpa %s316, 1
    %318 = vsyncpa [#allocation4], 1
    %s319 = scalar_lea.sflag [#allocation4], 1
    %320 = vsyncpa %s319, 1

// kernel: resblock_forward.3
$region0: #{resblock_forward.3}
  #allocation0 [shape = 'u32[]', space=smem, size = 0x4, offset = 0x4, fixed_abs, tag = 'smem constant byte address 0x4 - core index']
  #allocation1 [shape = 'u32[144,128]{1,0:T(1,128)}', space=vmem, size = 0x12000, scoped, tag = 'internal scratch']
  %s0 = inlined_call_operand.vmem [shape: f32[2,8,512], index: 0, kind: input, shape index: {}]
  %s1 = inlined_call_operand.vmem [shape: f32[3,8,8], index: 1, kind: input, shape index: {}]
  %s2 = inlined_call_operand.vmem [shape: f32[4,2,8,2], index: 2, kind: input, shape index: {}]
  %s3 = inlined_call_operand.vmem [shape: f32[2,8,512], index: 3, kind: output, shape index: {0}]
  %s4 = inlined_call_operand.vmem [shape: f32[2,8,2], index: 4, kind: output, shape index: {1}]
  %5 = xla_tuple %s3, %s4
  %s6 = sld [smem:[#allocation0]]
  $region57: #{resblock_forward.3} parent=0
    _
  %s8 = ssub.s32 1, %s6
  %s9 = scalar_select 0, %s8, %s6
  loop: start=0, step=1, limit=10
  $region2: #{resblock_forward.3} parent=0 // loop_pre_header
    _
  $region3: #{resblock_forward.3} parent=0 // loop_header
    %s11 = sphi 0, %s15
    %p12 = scmp.ge.s32.totalorder %s11, 10
    %s18 = sphi 0, %s30
    %s19 = sphi 0, %s26
    %s20 = sphi 0, %s18
    %s21 = sphi 0, %s19
    %s22 = sphi 0, %s20
    %s23 = sphi 0, %s21
    %s35 = sphi 0, %s37
    %s38 = sphi 0, %s35
    %s39 = sphi 0, %s38
    %s55 = sphi 0, %s39
    %s59 = sphi 0, %s59
    %s61 = sphi 0, %s59
    %s62 = sphi 0, %s61
    %s76 = sphi 0, %s62
    %s84 = sphi 0, %s86
    %s87 = sphi 0, %s84
    %s88 = sphi 0, %s87
    %s104 = sphi 0, %s88
    %s112 = sphi 0, %s114
    %s115 = sphi 0, %s112
    %s116 = sphi 0, %s115
    %s132 = sphi 0, %s116
    %s138 = sphi 0, %s140
    %s141 = sphi 0, %s138
    %s142 = sphi 0, %s141
    %s158 = sphi 0, %s142
  $region4: #{resblock_forward.3} parent=0 // loop_header_branch
    %14 = sbr.rel (%p12) target = $region8
  $region5: #{resblock_forward.3} parent=0 // loop_body
    %s16 = ssub.s32 %s11, 1
    %s17 = ssub.s32 %s11, 2
    %s24 = sadd.s32 1, %s19
    %p25 = scmp.ge.s32.totalorder %s24, 4
    %s26 = scalar_select %p25, 0, %s24
    %s27 = sadd.s32 1, %s18
    %s28 = scalar_select %p25, %s27, %s18
    %p29 = scmp.ge.s32.totalorder %s28, 2
    %s30 = scalar_select %p29, 0, %s28
    %s31 = ssub.s32 %s18, %s30
    %s32 = ssub.s32 %s19, %s26
    %s33 = sor.u32 %s31, %s32
    %p34 = scmp.eq.s32.totalorder %s33, 0
    %s36 = sadd.s32 %s35, 1
    %s37 = scalar_select %p34, %s35, %s36
    %p40 = pneg %p34
    %p41 = scmp.eq.s32.totalorder %s11, 7
    %p42 = por %p40, %p41
    %p43 = scmp.ne.s32.totalorder %s35, %s38
    %p44 = scmp.eq.s32.totalorder %s11, 0
    %p45 = por %p43, %p44
    %p46 = scmp.ne.s32.totalorder %s35, %s38
    %p47 = scmp.eq.s32.totalorder %s16, 7
    %p48 = por %p46, %p47
    %p49 = scmp.ne.s32.totalorder %s38, %s39
    %p50 = scmp.eq.s32.totalorder %s16, 0
    %p51 = por %p49, %p50
    %p52 = scmp.ne.s32.totalorder %s38, %s39
    %p53 = scmp.eq.s32.totalorder %s17, 7
    %p54 = por %p52, %p53
    %p56 = scmp.ne.s32.totalorder %s39, %s55
    %p57 = scmp.eq.s32.totalorder %s17, 0
    %p58 = por %p56, %p57
    %s60 = sadd.s32 %s59, 1
    %p63 = scmp.eq.s32.totalorder %s11, 7
    %p64 = scmp.ne.s32.totalorder %s59, %s61
    %p65 = scmp.eq.s32.totalorder %s11, 0
    %p66 = por %p64, %p65
    %p67 = scmp.ne.s32.totalorder %s59, %s61
    %p68 = scmp.eq.s32.totalorder %s16, 7
    %p69 = por %p67, %p68
    %p70 = scmp.ne.s32.totalorder %s61, %s62
    %p71 = scmp.eq.s32.totalorder %s16, 0
    %p72 = por %p70, %p71
    %p73 = scmp.ne.s32.totalorder %s61, %s62
    %p74 = scmp.eq.s32.totalorder %s17, 7
    %p75 = por %p73, %p74
    %p77 = scmp.ne.s32.totalorder %s62, %s76
    %p78 = scmp.eq.s32.totalorder %s17, 0
    %p79 = por %p77, %p78
    %s80 = ssub.s32 %s19, %s26
    %s81 = ssub.s32 %s18, %s30
    %s82 = sor.u32 %s80, %s81
    %p83 = scmp.eq.s32.totalorder %s82, 0
    %s85 = sadd.s32 %s84, 1
    %s86 = scalar_select %p83, %s84, %s85
    %p89 = pneg %p83
    %p90 = scmp.eq.s32.totalorder %s11, 7
    %p91 = por %p89, %p90
    %p92 = scmp.ne.s32.totalorder %s84, %s87
    %p93 = scmp.eq.s32.totalorder %s11, 0
    %p94 = por %p92, %p93
    %p95 = scmp.ne.s32.totalorder %s84, %s87
    %p96 = scmp.eq.s32.totalorder %s16, 7
    %p97 = por %p95, %p96
    %p98 = scmp.ne.s32.totalorder %s87, %s88
    %p99 = scmp.eq.s32.totalorder %s16, 0
    %p100 = por %p98, %p99
    %p101 = scmp.ne.s32.totalorder %s87, %s88
    %p102 = scmp.eq.s32.totalorder %s17, 7
    %p103 = por %p101, %p102
    %p105 = scmp.ne.s32.totalorder %s88, %s104
    %p106 = scmp.eq.s32.totalorder %s17, 0
    %p107 = por %p105, %p106
    %s108 = ssub.s32 %s18, %s30
    %s109 = ssub.s32 %s19, %s26
    %s110 = sor.u32 %s108, %s109
    %p111 = scmp.eq.s32.totalorder %s110, 0
    %s113 = sadd.s32 %s112, 1
    %s114 = scalar_select %p111, %s112, %s113
    %p117 = pneg %p111
    %p118 = scmp.eq.s32.totalorder %s11, 7
    %p119 = por %p117, %p118
    %p120 = scmp.ne.s32.totalorder %s112, %s115
    %p121 = scmp.eq.s32.totalorder %s11, 0
    %p122 = por %p120, %p121
    %p123 = scmp.ne.s32.totalorder %s112, %s115
    %p124 = scmp.eq.s32.totalorder %s16, 7
    %p125 = por %p123, %p124
    %p126 = scmp.ne.s32.totalorder %s115, %s116
    %p127 = scmp.eq.s32.totalorder %s16, 0
    %p128 = por %p126, %p127
    %p129 = scmp.ne.s32.totalorder %s115, %s116
    %p130 = scmp.eq.s32.totalorder %s17, 7
    %p131 = por %p129, %p130
    %p133 = scmp.ne.s32.totalorder %s116, %s132
    %p134 = scmp.eq.s32.totalorder %s17, 0
    %p135 = por %p133, %p134
    %s136 = ssub.s32 %s18, %s30
    %p137 = scmp.eq.s32.totalorder %s136, 0
    %s139 = sadd.s32 %s138, 1
    %s140 = scalar_select %p137, %s138, %s139
    %p143 = pneg %p137
    %p144 = scmp.eq.s32.totalorder %s11, 7
    %p145 = por %p143, %p144
    %p146 = scmp.ne.s32.totalorder %s138, %s141
    %p147 = scmp.eq.s32.totalorder %s11, 0
    %p148 = por %p146, %p147
    %p149 = scmp.ne.s32.totalorder %s138, %s141
    %p150 = scmp.eq.s32.totalorder %s16, 7
    %p151 = por %p149, %p150
    %p152 = scmp.ne.s32.totalorder %s141, %s142
    %p153 = scmp.eq.s32.totalorder %s16, 0
    %p154 = por %p152, %p153
    %p155 = scmp.ne.s32.totalorder %s141, %s142
    %p156 = scmp.eq.s32.totalorder %s17, 7
    %p157 = por %p155, %p156
    %p159 = scmp.ne.s32.totalorder %s142, %s158
    %p160 = scmp.eq.s32.totalorder %s17, 0
    %p161 = por %p159, %p160
    %p162 = scmp.le.s32.totalorder 1, %s11
    %p163 = scmp.lt.s32.totalorder %s11, 9
    %p164 = pnand %p162, %p163
    %p165 = pneg %p164
    // Predicated region
    $region9: #{resblock_forward.3} parent=5 // pred_check
      _
    $region10: #{resblock_forward.3} parent=5 // pred_check_branch
      %167 = sbr.rel (%p164) target = $region12
    $region11: #{resblock_forward.3} parent=5 // pred_region
      %s168 = ssub.s32 %s11, 1
      // Predicated region
      $region13: #{resblock_forward.3} parent=11 // pred_check
        %p169 = pneg %p72
      $region14: #{resblock_forward.3} parent=11 // pred_check_branch
        %171 = sbr.rel (%p169) target = $region16
      $region15: #{resblock_forward.3} parent=11 // pred_region
        _
      $region16: #{resblock_forward.3} parent=11 // pred_fallthru
        _
    $region12: #{resblock_forward.3} parent=5 // pred_fallthru
      _
    %p172 = scmp.lt.s32.totalorder %s11, 8
    // Predicated region
    $region17: #{resblock_forward.3} parent=5 // pred_check
      %p173 = pneg %p172
    $region18: #{resblock_forward.3} parent=5 // pred_check_branch
      %175 = sbr.rel (%p173) target = $region20
    $region19: #{resblock_forward.3} parent=5 // pred_region
      // Predicated region
      $region21: #{resblock_forward.3} parent=19 // pred_check
        %p176 = pneg %p45
      $region22: #{resblock_forward.3} parent=19 // pred_check_branch
        %178 = sbr.rel (%p176) target = $region24
      $region23: #{resblock_forward.3} parent=19 // pred_region
        %p179 = scmp.lt.s32.totalorder %s18, 1
        %s180 = scalar_select %p179, %s18, 1
        %p181 = scmp.lt.s32.totalorder %s19, 3
        %s182 = scalar_select %p181, %s19, 3
        %s183 = smul.addr %s180, 4
        %s184 = sadd.s32 %s182, %s183
        %s185 = smul.addr %s184, 8
        %s186 = scalar_lea.vmem %s0, %s185
      $region24: #{resblock_forward.3} parent=19 // pred_fallthru
        _
      // Predicated region
      $region25: #{resblock_forward.3} parent=19 // pred_check
        %p187 = pneg %p94
      $region26: #{resblock_forward.3} parent=19 // pred_check_branch
        %189 = sbr.rel (%p187) target = $region28
      $region27: #{resblock_forward.3} parent=19 // pred_region
        %p190 = scmp.lt.s32.totalorder %s19, 3
        %s191 = scalar_select %p190, %s19, 3
        %p192 = scmp.lt.s32.totalorder %s18, 1
        %s193 = scalar_select %p192, %s18, 1
        %s194 = smul.addr %s191, 2
        %s195 = sadd.s32 %s193, %s194
        %s196 = smul.addr %s195, 8
        %s197 = scalar_lea.vmem %s2, %s196
      $region28: #{resblock_forward.3} parent=19 // pred_fallthru
        _
    $region20: #{resblock_forward.3} parent=5 // pred_fallthru
      _
    %p198 = scmp.le.s32.totalorder 1, %s11
    %p199 = scmp.lt.s32.totalorder %s11, 9
    %p200 = pnand %p198, %p199
    %p201 = pneg %p200
    // Predicated region
    $region29: #{resblock_forward.3} parent=5 // pred_check
      _
    $region30: #{resblock_forward.3} parent=5 // pred_check_branch
      %203 = sbr.rel (%p200) target = $region32
    $region31: #{resblock_forward.3} parent=5 // pred_region
      %s204 = ssub.s32 %s11, 1
      %p205 = scmp.lt.s32.totalorder %s20, 1
      %s206 = scalar_select %p205, %s20, 1
      %p207 = scmp.lt.s32.totalorder %s21, 3
      %s208 = scalar_select %p207, %s21, 3
      %s209 = smul.addr %s206, 4
      %s210 = sadd.s32 %s208, %s209
      %s211 = smul.addr %s210, 8
      %s212 = scalar_lea.vmem %s0, %s211
      %p213 = pneg %p51
      %p214 = pneg %p48
      %p215 = pneg %p72
      %p216 = pneg %p69
      %p217 = scmp.lt.s32.totalorder %s21, 3
      %s218 = scalar_select %p217, %s21, 3
      %p219 = scmp.lt.s32.totalorder %s20, 1
      %s220 = scalar_select %p219, %s20, 1
      %s221 = smul.addr %s218, 2
      %s222 = sadd.s32 %s220, %s221
      %s223 = smul.addr %s222, 8
      %s224 = scalar_lea.vmem %s2, %s223
      %p225 = pneg %p100
      %p226 = pneg %p97
      %p227 = pneg %p128
      %p228 = pneg %p125
      %p229 = scmp.lt.s32.totalorder %s20, 1
      %s230 = scalar_select %p229, %s20, 1
      %p231 = scmp.lt.s32.totalorder %s21, 3
      %s232 = scalar_select %p231, %s21, 3
      %s233 = smul.addr %s230, 4
      %s234 = sadd.s32 %s232, %s233
      %s235 = smul.addr %s234, 8
      %s236 = scalar_lea.vmem %s3, %s235
      %p237 = pneg %p154
      %p238 = pneg %p151
      %p239 = scmp.lt.s32.totalorder %s20, 1
      %s240 = scalar_select %p239, %s20, 1
      %s241 = smul.addr %s240, 8
      %s242 = scalar_lea.vmem %s4, %s241
      %p243 = scmp.lt.s32.totalorder %s20, 1
      %s244 = scalar_select %p243, %s20, 1
      %p245 = scmp.lt.s32.totalorder %s21, 3
      %s246 = scalar_select %p245, %s21, 3
      %s247 = smul.addr %s244, 4
      %s248 = sadd.s32 %s246, %s247
      %s249 = smul.addr %s248, 8
      %s250 = scalar_lea.vmem %s0, %s249
      %p251 = scmp.lt.s32.totalorder %s21, 3
      %s252 = scalar_select %p251, %s21, 3
      %p253 = scmp.lt.s32.totalorder %s20, 1
      %s254 = scalar_select %p253, %s20, 1
      %s255 = smul.addr %s252, 2
      %s256 = sadd.s32 %s254, %s255
      %s257 = smul.addr %s256, 8
      %s258 = scalar_lea.vmem %s2, %s257
      %p259 = scmp.lt.s32.totalorder %s20, 1
      %s260 = scalar_select %p259, %s20, 1
      %p261 = scmp.lt.s32.totalorder %s21, 3
      %s262 = scalar_select %p261, %s21, 3
      %s263 = smul.addr %s260, 4
      %s264 = sadd.s32 %s262, %s263
      %s265 = smul.addr %s264, 8
      %s266 = scalar_lea.vmem %s3, %s265
      %p267 = scmp.lt.s32.totalorder %s20, 1
      %s268 = scalar_select %p267, %s20, 1
      %s269 = smul.addr %s268, 8
      %s270 = scalar_lea.vmem %s4, %s269
      %p271 = scmp.eq.s32.totalorder %s21, 0
      // Predicated region
      $region33: #{resblock_forward.3} parent=31 // pred_check
        %p272 = pneg %p271
      $region34: #{resblock_forward.3} parent=31 // pred_check_branch
        %274 = sbr.rel (%p272) target = $region36
      $region35: #{resblock_forward.3} parent=31 // pred_region
        %vm275 = vcmask 15360
        %276 = vst.msk [vmem:[%s270] sm:$0xff] %vm275, 0.0
      $region36: #{resblock_forward.3} parent=31 // pred_fallthru
        _
      %v277 = vld [vmem:[%s1] sm:$0xff]
      %s278 = scalar_lea.vmem %s1, 8
      %v279 = vld [vmem:[%s278] sm:$0xff]
      %s280 = scalar_lea.vmem %s1, 16
      %v281 = vld [vmem:[%s280] sm:$0xff]
      %v282 = vlaneseq
      %v283 = vand.u32 %v282, 127
      %v284 = vld [vmem:[%s258] sm:$0xff]
      %v285 = vld [vmem:[%s250] sm:$0xff]
      %vm286 = vcmp.eq.s32.totalorder %v283, 0
      %287 = vrot.lane.b32.xlu0 %v285, 1
      %v288 = vpop.permute.xlu0 %287
      %290 = vset.pattern.permute.xlu0 0
      %291 = vperm.xlu0 %290, %v284
      %v292 = vpop.permute.xlu0 %291
      %v294 = vsel %vm286, %v292, %v288
      %vm295 = vcmp.eq.s32.totalorder %v283, 127
      %296 = vrot.lane.b32.xlu0 %v285, 127
      %v297 = vpop.permute.xlu0 %296
      %298 = vset.pattern.permute.xlu0 1
      %299 = vperm.xlu0 %298, %v284
      %v300 = vpop.permute.xlu0 %299
      %v302 = vsel %vm295, %v300, %v297
      %vm303 = vcmask 64512
      %v305 = vsel %vm303, %v277, 0
      %307 = vmatprep.subr.mxu0 0.0
      %308 = vmatpush1.msra.mxu0 0.0
      %309 = vmatprep.subr.mxu0 0.0
      %310 = vmatpush1.msra.mxu0 0.0
      %311 = vmatprep.subr.mxu0 0.0
      %312 = vmatpush1.msra.mxu0 0.0
      %313 = vmatprep.subr.mxu0 0.0
      %314 = vmatpush1.msra.mxu0 0.0
      %315 = vmatprep.subr.mxu0 0.0
      %316 = vmatpush1.msra.mxu0 0.0
      %317 = vmatprep.subr.mxu0 0.0
      %318 = vmatpush1.msra.mxu0 0.0
      %319 = vmatprep.subr.mxu0 0.0
      %320 = vmatpush1.msra.mxu0 0.0
      %321 = vmatprep.subr.mxu0 0.0
      %322 = vmatpush1.msra.mxu0 0.0
      %323 = vmatprep.subr.mxu0 0.0
      %324 = vmatpush1.msra.mxu0 0.0
      %325 = vmatprep.subr.mxu0 0.0
      %326 = vmatpush1.msra.mxu0 0.0
      %327 = vmatprep.subr.mxu0 0.0
      %328 = vmatpush1.msra.mxu0 0.0
      %329 = vmatprep.subr.mxu0 0.0
      %330 = vmatpush1.msra.mxu0 0.0
      %331 = vmatprep.subr.mxu0 0.0
      %332 = vmatpush1.msra.mxu0 0.0
      %333 = vmatprep.subr.mxu0 0.0
      %334 = vmatpush1.msra.mxu0 0.0
      %335 = vmatprep.subr.mxu0 0.0
      %336 = vmatpush1.msra.mxu0 0.0
      %337 = vmatprep.subr.mxu0 0.0
      %338 = vmatpush1.msra.mxu0 %v294
      %339 = vmatprep.subr.mxu0 0.0
      %340 = vmatpush2.msra.mxu0 0.0
      %341 = vmatprep.subr.mxu0 0.0
      %342 = vmatpush2.msra.mxu0 0.0
      %343 = vmatprep.subr.mxu0 0.0
      %344 = vmatpush2.msra.mxu0 0.0
      %345 = vmatprep.subr.mxu0 0.0
      %346 = vmatpush2.msra.mxu0 0.0
      %347 = vmatprep.subr.mxu0 0.0
      %348 = vmatpush2.msra.mxu0 0.0
      %349 = vmatprep.subr.mxu0 0.0
      %350 = vmatpush2.msra.mxu0 0.0
      %351 = vmatprep.subr.mxu0 0.0
      %352 = vmatpush2.msra.mxu0 0.0
      %353 = vmatprep.subr.mxu0 0.0
      %354 = vmatpush2.msra.mxu0 0.0
      %355 = vmatprep.subr.mxu0 0.0
      %356 = vmatpush2.msra.mxu0 0.0
      %357 = vmatprep.subr.mxu0 0.0
      %358 = vmatpush2.msra.mxu0 0.0
      %359 = vmatprep.subr.mxu0 0.0
      %360 = vmatpush2.msra.mxu0 0.0
      %361 = vmatprep.subr.mxu0 0.0
      %362 = vmatpush2.msra.mxu0 0.0
      %363 = vmatprep.subr.mxu0 0.0
      %364 = vmatpush2.msra.mxu0 0.0
      %365 = vmatprep.subr.mxu0 0.0
      %366 = vmatpush2.msra.mxu0 0.0
      %367 = vmatprep.subr.mxu0 0.0
      %368 = vmatpush2.msra.mxu0 0.0
      %369 = vmatprep.subr.mxu0 0.0
      %370 = vmatpush2.msra.mxu0 0.0
      %371 = vmatprep.mubr.f32.mxu0 0.0
      %372 = vmatmul.mubr.f32.gmra.mxu0 %v305
      %v373 = vpop.f32.mrf.mxu0
      %v374 = vadd.f32 0.0, %v373
      %v375 = vpop.f32.mrf.mxu0
      %376 = vdwg.mxu0
      %v378 = vsel %vm303, %v279, 0
      %380 = vmatprep.subr.mxu0 0.0
      %381 = vmatpush1.msra.mxu0 0.0
      %382 = vmatprep.subr.mxu0 0.0
      %383 = vmatpush1.msra.mxu0 0.0
      %384 = vmatprep.subr.mxu0 0.0
      %385 = vmatpush1.msra.mxu0 0.0
      %386 = vmatprep.subr.mxu0 0.0
      %387 = vmatpush1.msra.mxu0 0.0
      %388 = vmatprep.subr.mxu0 0.0
      %389 = vmatpush1.msra.mxu0 0.0
      %390 = vmatprep.subr.mxu0 0.0
      %391 = vmatpush1.msra.mxu0 0.0
      %392 = vmatprep.subr.mxu0 0.0
      %393 = vmatpush1.msra.mxu0 0.0
      %394 = vmatprep.subr.mxu0 0.0
      %395 = vmatpush1.msra.mxu0 0.0
      %396 = vmatprep.subr.mxu0 0.0
      %397 = vmatpush1.msra.mxu0 0.0
      %398 = vmatprep.subr.mxu0 0.0
      %399 = vmatpush1.msra.mxu0 0.0
      %400 = vmatprep.subr.mxu0 0.0
      %401 = vmatpush1.msra.mxu0 0.0
      %402 = vmatprep.subr.mxu0 0.0
      %403 = vmatpush1.msra.mxu0 0.0
      %404 = vmatprep.subr.mxu0 0.0
      %405 = vmatpush1.msra.mxu0 0.0
      %406 = vmatprep.subr.mxu0 0.0
      %407 = vmatpush1.msra.mxu0 0.0
      %408 = vmatprep.subr.mxu0 0.0
      %409 = vmatpush1.msra.mxu0 0.0
      %410 = vmatprep.subr.mxu0 0.0
      %411 = vmatpush1.msra.mxu0 %v285
      %412 = vmatprep.subr.mxu0 0.0
      %413 = vmatpush2.msra.mxu0 0.0
      %414 = vmatprep.subr.mxu0 0.0
      %415 = vmatpush2.msra.mxu0 0.0
      %416 = vmatprep.subr.mxu0 0.0
      %417 = vmatpush2.msra.mxu0 0.0
      %418 = vmatprep.subr.mxu0 0.0
      %419 = vmatpush2.msra.mxu0 0.0
      %420 = vmatprep.subr.mxu0 0.0
      %421 = vmatpush2.msra.mxu0 0.0
      %422 = vmatprep.subr.mxu0 0.0
      %423 = vmatpush2.msra.mxu0 0.0
      %424 = vmatprep.subr.mxu0 0.0
      %425 = vmatpush2.msra.mxu0 0.0
      %426 = vmatprep.subr.mxu0 0.0
      %427 = vmatpush2.msra.mxu0 0.0
      %428 = vmatprep.subr.mxu0 0.0
      %429 = vmatpush2.msra.mxu0 0.0
      %430 = vmatprep.subr.mxu0 0.0
      %431 = vmatpush2.msra.mxu0 0.0
      %432 = vmatprep.subr.mxu0 0.0
      %433 = vmatpush2.msra.mxu0 0.0
      %434 = vmatprep.subr.mxu0 0.0
      %435 = vmatpush2.msra.mxu0 0.0
      %436 = vmatprep.subr.mxu0 0.0
      %437 = vmatpush2.msra.mxu0 0.0
      %438 = vmatprep.subr.mxu0 0.0
      %439 = vmatpush2.msra.mxu0 0.0
      %440 = vmatprep.subr.mxu0 0.0
      %441 = vmatpush2.msra.mxu0 0.0
      %442 = vmatprep.subr.mxu0 0.0
      %443 = vmatpush2.msra.mxu0 0.0
      %444 = vmatprep.mubr.f32.mxu0 0.0
      %445 = vmatmul.mubr.f32.gmra.mxu0 %v378
      %v446 = vpop.f32.mrf.mxu0
      %v447 = vadd.f32 %v374, %v446
      %v448 = vpop.f32.mrf.mxu0
      %449 = vdwg.mxu0
      %v451 = vsel %vm303, %v281, 0
      %453 = vmatprep.subr.mxu0 0.0
      %454 = vmatpush1.msra.mxu0 0.0
      %455 = vmatprep.subr.mxu0 0.0
      %456 = vmatpush1.msra.mxu0 0.0
      %457 = vmatprep.subr.mxu0 0.0
      %458 = vmatpush1.msra.mxu0 0.0
      %459 = vmatprep.subr.mxu0 0.0
      %460 = vmatpush1.msra.mxu0 0.0
      %461 = vmatprep.subr.mxu0 0.0
      %462 = vmatpush1.msra.mxu0 0.0
      %463 = vmatprep.subr.mxu0 0.0
      %464 = vmatpush1.msra.mxu0 0.0
      %465 = vmatprep.subr.mxu0 0.0
      %466 = vmatpush1.msra.mxu0 0.0
      %467 = vmatprep.subr.mxu0 0.0
      %468 = vmatpush1.msra.mxu0 0.0
      %469 = vmatprep.subr.mxu0 0.0
      %470 = vmatpush1.msra.mxu0 0.0
      %471 = vmatprep.subr.mxu0 0.0
      %472 = vmatpush1.msra.mxu0 0.0
      %473 = vmatprep.subr.mxu0 0.0
      %474 = vmatpush1.msra.mxu0 0.0
      %475 = vmatprep.subr.mxu0 0.0
      %476 = vmatpush1.msra.mxu0 0.0
      %477 = vmatprep.subr.mxu0 0.0
      %478 = vmatpush1.msra.mxu0 0.0
      %479 = vmatprep.subr.mxu0 0.0
      %480 = vmatpush1.msra.mxu0 0.0
      %481 = vmatprep.subr.mxu0 0.0
      %482 = vmatpush1.msra.mxu0 0.0
      %483 = vmatprep.subr.mxu0 0.0
      %484 = vmatpush1.msra.mxu0 %v302
      %485 = vmatprep.subr.mxu0 0.0
      %486 = vmatpush2.msra.mxu0 0.0
      %487 = vmatprep.subr.mxu0 0.0
      %488 = vmatpush2.msra.mxu0 0.0
      %489 = vmatprep.subr.mxu0 0.0
      %490 = vmatpush2.msra.mxu0 0.0
      %491 = vmatprep.subr.mxu0 0.0
      %492 = vmatpush2.msra.mxu0 0.0
      %493 = vmatprep.subr.mxu0 0.0
      %494 = vmatpush2.msra.mxu0 0.0
      %495 = vmatprep.subr.mxu0 0.0
      %496 = vmatpush2.msra.mxu0 0.0
      %497 = vmatprep.subr.mxu0 0.0
      %498 = vmatpush2.msra.mxu0 0.0
      %499 = vmatprep.subr.mxu0 0.0
      %500 = vmatpush2.msra.mxu0 0.0
      %501 = vmatprep.subr.mxu0 0.0
      %502 = vmatpush2.msra.mxu0 0.0
      %503 = vmatprep.subr.mxu0 0.0
      %504 = vmatpush2.msra.mxu0 0.0
      %505 = vmatprep.subr.mxu0 0.0
      %506 = vmatpush2.msra.mxu0 0.0
      %507 = vmatprep.subr.mxu0 0.0
      %508 = vmatpush2.msra.mxu0 0.0
      %509 = vmatprep.subr.mxu0 0.0
      %510 = vmatpush2.msra.mxu0 0.0
      %511 = vmatprep.subr.mxu0 0.0
      %512 = vmatpush2.msra.mxu0 0.0
      %513 = vmatprep.subr.mxu0 0.0
      %514 = vmatpush2.msra.mxu0 0.0
      %515 = vmatprep.subr.mxu0 0.0
      %516 = vmatpush2.msra.mxu0 0.0
      %517 = vmatprep.mubr.f32.mxu0 0.0
      %518 = vmatmul.mubr.f32.gmra.mxu0 %v451
      %v519 = vpop.f32.mrf.mxu0
      %v520 = vadd.f32 0.0, %v519
      %v521 = vpop.f32.mrf.mxu0
      %522 = vdwg.mxu0
      %v523 = vadd.f32 %v447, %v520
      %524 = vst [vmem:[%s266] sm:$0xff] %v523
      %525 = vadd.xlane.f32.xlu0 %v523
      %v526 = vpop.xlane.xlu0 %525
      %v527 = vmul.f32 %v523, %v523
      %528 = vadd.xlane.f32.xlu0 %v527
      %v529 = vpop.xlane.xlu0 %528
      %vm530 = vcmask 7168
      %v531 = vsel %vm530, %v526, %v529
      %v532 = vadd.f32 %v531, 0.0
      %v533 = vld [vmem:[%s270] sm:$0xff]
      %v534 = vadd.f32 %v533, %v532
      %vm535 = vcmask 15360
      %536 = vst.msk [vmem:[%s270] sm:$0xff] %vm535, %v534
      %p537 = scmp.lt.s32.totalorder %s20, 1
      %s538 = scalar_select %p537, %s20, 1
      %p539 = scmp.lt.s32.totalorder %s21, 3
      %s540 = scalar_select %p539, %s21, 3
      %s541 = smul.addr %s538, 4
      %s542 = sadd.s32 %s540, %s541
      %s543 = smul.addr %s542, 8
      %s544 = scalar_lea.vmem %s3, %s543
      %p545 = scmp.lt.s32.totalorder %s20, 1
      %s546 = scalar_select %p545, %s20, 1
      %s547 = smul.addr %s546, 8
      %s548 = scalar_lea.vmem %s4, %s547
      // Predicated region
      $region37: #{resblock_forward.3} parent=31 // pred_check
        %p549 = pneg %p125
      $region38: #{resblock_forward.3} parent=31 // pred_check_branch
        %551 = sbr.rel (%p549) target = $region40
      $region39: #{resblock_forward.3} parent=31 // pred_region
        _
      $region40: #{resblock_forward.3} parent=31 // pred_fallthru
        _
      // Predicated region
      $region41: #{resblock_forward.3} parent=31 // pred_check
        %p552 = pneg %p151
      $region42: #{resblock_forward.3} parent=31 // pred_check_branch
        %554 = sbr.rel (%p552) target = $region44
      $region43: #{resblock_forward.3} parent=31 // pred_region
        _
      $region44: #{resblock_forward.3} parent=31 // pred_fallthru
        _
    $region32: #{resblock_forward.3} parent=5 // pred_fallthru
      _
    %p555 = scmp.le.s32.totalorder 2, %s11
    // Predicated region
    $region45: #{resblock_forward.3} parent=5 // pred_check
      %p556 = pneg %p555
    $region46: #{resblock_forward.3} parent=5 // pred_check_branch
      %558 = sbr.rel (%p556) target = $region48
    $region47: #{resblock_forward.3} parent=5 // pred_region
      %s559 = ssub.s32 %s11, 2
      // Predicated region
      $region49: #{resblock_forward.3} parent=47 // pred_check
        %p560 = pneg %p131
      $region50: #{resblock_forward.3} parent=47 // pred_check_branch
        %562 = sbr.rel (%p560) target = $region52
      $region51: #{resblock_forward.3} parent=47 // pred_region
        %p563 = scmp.lt.s32.totalorder %s22, 1
        %s564 = scalar_select %p563, %s22, 1
        %p565 = scmp.lt.s32.totalorder %s23, 3
        %s566 = scalar_select %p565, %s23, 3
        %s567 = smul.addr %s564, 4
        %s568 = sadd.s32 %s566, %s567
        %s569 = smul.addr %s568, 8
        %s570 = scalar_lea.vmem %s3, %s569
      $region52: #{resblock_forward.3} parent=47 // pred_fallthru
        _
      // Predicated region
      $region53: #{resblock_forward.3} parent=47 // pred_check
        %p571 = pneg %p157
      $region54: #{resblock_forward.3} parent=47 // pred_check_branch
        %573 = sbr.rel (%p571) target = $region56
      $region55: #{resblock_forward.3} parent=47 // pred_region
        %p574 = scmp.lt.s32.totalorder %s22, 1
        %s575 = scalar_select %p574, %s22, 1
        %s576 = smul.addr %s575, 8
        %s577 = scalar_lea.vmem %s4, %s576
      $region56: #{resblock_forward.3} parent=47 // pred_fallthru
        _
    $region48: #{resblock_forward.3} parent=5 // pred_fallthru
      _
  $region6: #{resblock_forward.3} parent=0 // loop_footer
    %s15 = sadd.s32 1, %s11
  $region7: #{resblock_forward.3} parent=0 // loop_footer_branch
    %10 = sbr.rel target = $region3
  $region8: #{resblock_forward.3} parent=0 // loop_exit
    _

// kernel: resblock_forward.4
$region0: #{resblock_forward.4}
  #allocation0 [shape = 'u32[]', space=smem, size = 0x4, offset = 0x4, fixed_abs, tag = 'smem constant byte address 0x4 - core index']
  #allocation1 [shape = 'u32[144,128]{1,0:T(1,128)}', space=vmem, size = 0x12000, scoped, tag = 'internal scratch']
  %s0 = inlined_call_operand.vmem [shape: f32[2,8,512], index: 0, kind: input, shape index: {}]
  %s1 = inlined_call_operand.vmem [shape: f32[8,1], index: 1, kind: input, shape index: {}]
  %s2 = inlined_call_operand.vmem [shape: f32[8,1], index: 2, kind: input, shape index: {}]
  %s3 = inlined_call_operand.vmem [shape: f32[3,8,8], index: 3, kind: input, shape index: {}]
  %s4 = inlined_call_operand.vmem [shape: f32[4,2,8,2], index: 4, kind: input, shape index: {}]
  %s5 = inlined_call_operand.hbm [shape: f32[2,8,512], index: 5, kind: output, shape index: {0}]
  %s6 = inlined_call_operand.vmem [shape: f32[2,8,2], index: 6, kind: output, shape index: {1}]
  %7 = xla_tuple %s5, %s6
  %s8 = sld [smem:[#allocation0]]
  $region65: #{resblock_forward.4} parent=0
    _
  %s10 = ssub.s32 1, %s8
  %s11 = scalar_select 0, %s10, %s8
  $region1: #{resblock_forward.4} parent=0
    #allocation2 [shape = 'u8[8192]{0}', space=vmem, size = 0x2000, scoped, tag = 'output window, operand 0']
    #allocation3 [shape = 's32[2]{0}', space=sflag, size = 0x8, scoped, tag = 'scoped memory for resblock_forward.4']
    %12 = vsyncpa [#allocation3], 0
    %s13 = scalar_lea.sflag [#allocation3], 1
    %14 = vsyncpa %s13, 0
    loop: start=0, step=1, limit=10
    $region2: #{resblock_forward.4} parent=1 // loop_pre_header
      _
    $region3: #{resblock_forward.4} parent=1 // loop_header
      %s16 = sphi 0, %s20
      %p17 = scmp.ge.s32.totalorder %s16, 10
      %s23 = sphi 0, %s35
      %s24 = sphi 0, %s31
      %s25 = sphi 0, %s23
      %s26 = sphi 0, %s24
      %s27 = sphi 0, %s25
      %s28 = sphi 0, %s26
      %s40 = sphi 0, %s42
      %s43 = sphi 0, %s40
      %s44 = sphi 0, %s43
      %s60 = sphi 0, %s44
      %s64 = sphi 0, %s64
      %s66 = sphi 0, %s64
      %s67 = sphi 0, %s66
      %s81 = sphi 0, %s67
      %s85 = sphi 0, %s85
      %s87 = sphi 0, %s85
      %s88 = sphi 0, %s87
      %s102 = sphi 0, %s88
      %s106 = sphi 0, %s106
      %s108 = sphi 0, %s106
      %s109 = sphi 0, %s108
      %s123 = sphi 0, %s109
      %s131 = sphi 0, %s133
      %s134 = sphi 0, %s131
      %s135 = sphi 0, %s134
      %s151 = sphi 0, %s135
      %s159 = sphi 0, %s161
      %s162 = sphi 0, %s159
      %s163 = sphi 0, %s162
      %s179 = sphi 0, %s163
      %s185 = sphi 0, %s187
      %s188 = sphi 0, %s185
      %s189 = sphi 0, %s188
      %s205 = sphi 0, %s189
    $region4: #{resblock_forward.4} parent=1 // loop_header_branch
      %19 = sbr.rel (%p17) target = $region8
    $region5: #{resblock_forward.4} parent=1 // loop_body
      %s21 = ssub.s32 %s16, 1
      %s22 = ssub.s32 %s16, 2
      %s29 = sadd.s32 1, %s24
      %p30 = scmp.ge.s32.totalorder %s29, 4
      %s31 = scalar_select %p30, 0, %s29
      %s32 = sadd.s32 1, %s23
      %s33 = scalar_select %p30, %s32, %s23
      %p34 = scmp.ge.s32.totalorder %s33, 2
      %s35 = scalar_select %p34, 0, %s33
      %s36 = ssub.s32 %s23, %s35
      %s37 = ssub.s32 %s24, %s31
      %s38 = sor.u32 %s36, %s37
      %p39 = scmp.eq.s32.totalorder %s38, 0
      %s41 = sadd.s32 %s40, 1
      %s42 = scalar_select %p39, %s40, %s41
      %p45 = pneg %p39
      %p46 = scmp.eq.s32.totalorder %s16, 7
      %p47 = por %p45, %p46
      %p48 = scmp.ne.s32.totalorder %s40, %s43
      %p49 = scmp.eq.s32.totalorder %s16, 0
      %p50 = por %p48, %p49
      %p51 = scmp.ne.s32.totalorder %s40, %s43
      %p52 = scmp.eq.s32.totalorder %s21, 7
      %p53 = por %p51, %p52
      %p54 = scmp.ne.s32.totalorder %s43, %s44
      %p55 = scmp.eq.s32.totalorder %s21, 0
      %p56 = por %p54, %p55
      %p57 = scmp.ne.s32.totalorder %s43, %s44
      %p58 = scmp.eq.s32.totalorder %s22, 7
      %p59 = por %p57, %p58
      %p61 = scmp.ne.s32.totalorder %s44, %s60
      %p62 = scmp.eq.s32.totalorder %s22, 0
      %p63 = por %p61, %p62
      %s65 = sadd.s32 %s64, 1
      %p68 = scmp.eq.s32.totalorder %s16, 7
      %p69 = scmp.ne.s32.totalorder %s64, %s66
      %p70 = scmp.eq.s32.totalorder %s16, 0
      %p71 = por %p69, %p70
      %p72 = scmp.ne.s32.totalorder %s64, %s66
      %p73 = scmp.eq.s32.totalorder %s21, 7
      %p74 = por %p72, %p73
      %p75 = scmp.ne.s32.totalorder %s66, %s67
      %p76 = scmp.eq.s32.totalorder %s21, 0
      %p77 = por %p75, %p76
      %p78 = scmp.ne.s32.totalorder %s66, %s67
      %p79 = scmp.eq.s32.totalorder %s22, 7
      %p80 = por %p78, %p79
      %p82 = scmp.ne.s32.totalorder %s67, %s81
      %p83 = scmp.eq.s32.totalorder %s22, 0
      %p84 = por %p82, %p83
      %s86 = sadd.s32 %s85, 1
      %p89 = scmp.eq.s32.totalorder %s16, 7
      %p90 = scmp.ne.s32.totalorder %s85, %s87
      %p91 = scmp.eq.s32.totalorder %s16, 0
      %p92 = por %p90, %p91
      %p93 = scmp.ne.s32.totalorder %s85, %s87
      %p94 = scmp.eq.s32.totalorder %s21, 7
      %p95 = por %p93, %p94
      %p96 = scmp.ne.s32.totalorder %s87, %s88
      %p97 = scmp.eq.s32.totalorder %s21, 0
      %p98 = por %p96, %p97
      %p99 = scmp.ne.s32.totalorder %s87, %s88
      %p100 = scmp.eq.s32.totalorder %s22, 7
      %p101 = por %p99, %p100
      %p103 = scmp.ne.s32.totalorder %s88, %s102
      %p104 = scmp.eq.s32.totalorder %s22, 0
      %p105 = por %p103, %p104
      %s107 = sadd.s32 %s106, 1
      %p110 = scmp.eq.s32.totalorder %s16, 7
      %p111 = scmp.ne.s32.totalorder %s106, %s108
      %p112 = scmp.eq.s32.totalorder %s16, 0
      %p113 = por %p111, %p112
      %p114 = scmp.ne.s32.totalorder %s106, %s108
      %p115 = scmp.eq.s32.totalorder %s21, 7
      %p116 = por %p114, %p115
      %p117 = scmp.ne.s32.totalorder %s108, %s109
      %p118 = scmp.eq.s32.totalorder %s21, 0
      %p119 = por %p117, %p118
      %p120 = scmp.ne.s32.totalorder %s108, %s109
      %p121 = scmp.eq.s32.totalorder %s22, 7
      %p122 = por %p120, %p121
      %p124 = scmp.ne.s32.totalorder %s109, %s123
      %p125 = scmp.eq.s32.totalorder %s22, 0
      %p126 = por %p124, %p125
      %s127 = ssub.s32 %s24, %s31
      %s128 = ssub.s32 %s23, %s35
      %s129 = sor.u32 %s127, %s128
      %p130 = scmp.eq.s32.totalorder %s129, 0
      %s132 = sadd.s32 %s131, 1
      %s133 = scalar_select %p130, %s131, %s132
      %p136 = pneg %p130
      %p137 = scmp.eq.s32.totalorder %s16, 7
      %p138 = por %p136, %p137
      %p139 = scmp.ne.s32.totalorder %s131, %s134
      %p140 = scmp.eq.s32.totalorder %s16, 0
      %p141 = por %p139, %p140
      %p142 = scmp.ne.s32.totalorder %s131, %s134
      %p143 = scmp.eq.s32.totalorder %s21, 7
      %p144 = por %p142, %p143
      %p145 = scmp.ne.s32.totalorder %s134, %s135
      %p146 = scmp.eq.s32.totalorder %s21, 0
      %p147 = por %p145, %p146
      %p148 = scmp.ne.s32.totalorder %s134, %s135
      %p149 = scmp.eq.s32.totalorder %s22, 7
      %p150 = por %p148, %p149
      %p152 = scmp.ne.s32.totalorder %s135, %s151
      %p153 = scmp.eq.s32.totalorder %s22, 0
      %p154 = por %p152, %p153
      %s155 = ssub.s32 %s23, %s35
      %s156 = ssub.s32 %s24, %s31
      %s157 = sor.u32 %s155, %s156
      %p158 = scmp.eq.s32.totalorder %s157, 0
      %s160 = sadd.s32 %s159, 1
      %s161 = scalar_select %p158, %s159, %s160
      %p164 = pneg %p158
      %p165 = scmp.eq.s32.totalorder %s16, 7
      %p166 = por %p164, %p165
      %p167 = scmp.ne.s32.totalorder %s159, %s162
      %p168 = scmp.eq.s32.totalorder %s16, 0
      %p169 = por %p167, %p168
      %p170 = scmp.ne.s32.totalorder %s159, %s162
      %p171 = scmp.eq.s32.totalorder %s21, 7
      %p172 = por %p170, %p171
      %p173 = scmp.ne.s32.totalorder %s162, %s163
      %p174 = scmp.eq.s32.totalorder %s21, 0
      %p175 = por %p173, %p174
      %p176 = scmp.ne.s32.totalorder %s162, %s163
      %p177 = scmp.eq.s32.totalorder %s22, 7
      %p178 = por %p176, %p177
      %p180 = scmp.ne.s32.totalorder %s163, %s179
      %p181 = scmp.eq.s32.totalorder %s22, 0
      %p182 = por %p180, %p181
      %s183 = ssub.s32 %s23, %s35
      %p184 = scmp.eq.s32.totalorder %s183, 0
      %s186 = sadd.s32 %s185, 1
      %s187 = scalar_select %p184, %s185, %s186
      %p190 = pneg %p184
      %p191 = scmp.eq.s32.totalorder %s16, 7
      %p192 = por %p190, %p191
      %p193 = scmp.ne.s32.totalorder %s185, %s188
      %p194 = scmp.eq.s32.totalorder %s16, 0
      %p195 = por %p193, %p194
      %p196 = scmp.ne.s32.totalorder %s185, %s188
      %p197 = scmp.eq.s32.totalorder %s21, 7
      %p198 = por %p196, %p197
      %p199 = scmp.ne.s32.totalorder %s188, %s189
      %p200 = scmp.eq.s32.totalorder %s21, 0
      %p201 = por %p199, %p200
      %p202 = scmp.ne.s32.totalorder %s188, %s189
      %p203 = scmp.eq.s32.totalorder %s22, 7
      %p204 = por %p202, %p203
      %p206 = scmp.ne.s32.totalorder %s189, %s205
      %p207 = scmp.eq.s32.totalorder %s22, 0
      %p208 = por %p206, %p207
      %p209 = scmp.le.s32.totalorder 1, %s16
      %p210 = scmp.lt.s32.totalorder %s16, 9
      %p211 = pnand %p209, %p210
      %p212 = pneg %p211
      // Predicated region
      $region9: #{resblock_forward.4} parent=5 // pred_check
        _
      $region10: #{resblock_forward.4} parent=5 // pred_check_branch
        %214 = sbr.rel (%p211) target = $region12
      $region11: #{resblock_forward.4} parent=5 // pred_region
        %s215 = ssub.s32 %s16, 1
        // Predicated region
        $region13: #{resblock_forward.4} parent=11 // pred_check
          %p216 = pneg %p77
        $region14: #{resblock_forward.4} parent=11 // pred_check_branch
          %218 = sbr.rel (%p216) target = $region16
        $region15: #{resblock_forward.4} parent=11 // pred_region
          _
        $region16: #{resblock_forward.4} parent=11 // pred_fallthru
          _
        // Predicated region
        $region17: #{resblock_forward.4} parent=11 // pred_check
          %p219 = pneg %p98
        $region18: #{resblock_forward.4} parent=11 // pred_check_branch
          %221 = sbr.rel (%p219) target = $region20
        $region19: #{resblock_forward.4} parent=11 // pred_region
          _
        $region20: #{resblock_forward.4} parent=11 // pred_fallthru
          _
        // Predicated region
        $region21: #{resblock_forward.4} parent=11 // pred_check
          %p222 = pneg %p119
        $region22: #{resblock_forward.4} parent=11 // pred_check_branch
          %224 = sbr.rel (%p222) target = $region24
        $region23: #{resblock_forward.4} parent=11 // pred_region
          _
        $region24: #{resblock_forward.4} parent=11 // pred_fallthru
          _
      $region12: #{resblock_forward.4} parent=5 // pred_fallthru
        _
      %p225 = scmp.lt.s32.totalorder %s16, 8
      // Predicated region
      $region25: #{resblock_forward.4} parent=5 // pred_check
        %p226 = pneg %p225
      $region26: #{resblock_forward.4} parent=5 // pred_check_branch
        %228 = sbr.rel (%p226) target = $region28
      $region27: #{resblock_forward.4} parent=5 // pred_region
        // Predicated region
        $region29: #{resblock_forward.4} parent=27 // pred_check
          %p229 = pneg %p50
        $region30: #{resblock_forward.4} parent=27 // pred_check_branch
          %231 = sbr.rel (%p229) target = $region32
        $region31: #{resblock_forward.4} parent=27 // pred_region
          %p232 = scmp.lt.s32.totalorder %s23, 1
          %s233 = scalar_select %p232, %s23, 1
          %p234 = scmp.lt.s32.totalorder %s24, 3
          %s235 = scalar_select %p234, %s24, 3
          %s236 = smul.addr %s233, 4
          %s237 = sadd.s32 %s235, %s236
          %s238 = smul.addr %s237, 8
          %s239 = scalar_lea.vmem %s0, %s238
        $region32: #{resblock_forward.4} parent=27 // pred_fallthru
          _
        // Predicated region
        $region33: #{resblock_forward.4} parent=27 // pred_check
          %p240 = pneg %p141
        $region34: #{resblock_forward.4} parent=27 // pred_check_branch
          %242 = sbr.rel (%p240) target = $region36
        $region35: #{resblock_forward.4} parent=27 // pred_region
          %p243 = scmp.lt.s32.totalorder %s24, 3
          %s244 = scalar_select %p243, %s24, 3
          %p245 = scmp.lt.s32.totalorder %s23, 1
          %s246 = scalar_select %p245, %s23, 1
          %s247 = smul.addr %s244, 2
          %s248 = sadd.s32 %s246, %s247
          %s249 = smul.addr %s248, 8
          %s250 = scalar_lea.vmem %s4, %s249
        $region36: #{resblock_forward.4} parent=27 // pred_fallthru
          _
      $region28: #{resblock_forward.4} parent=5 // pred_fallthru
        _
      %p251 = scmp.le.s32.totalorder 1, %s16
      %p252 = scmp.lt.s32.totalorder %s16, 9
      %p253 = pnand %p251, %p252
      %p254 = pneg %p253
      // Predicated region
      $region37: #{resblock_forward.4} parent=5 // pred_check
        _
      $region38: #{resblock_forward.4} parent=5 // pred_check_branch
        %256 = sbr.rel (%p253) target = $region40
      $region39: #{resblock_forward.4} parent=5 // pred_region
        %s257 = ssub.s32 %s16, 1
        %p258 = scmp.lt.s32.totalorder %s25, 1
        %s259 = scalar_select %p258, %s25, 1
        %p260 = scmp.lt.s32.totalorder %s26, 3
        %s261 = scalar_select %p260, %s26, 3
        %s262 = smul.addr %s259, 4
        %s263 = sadd.s32 %s261, %s262
        %s264 = smul.addr %s263, 8
        %s265 = scalar_lea.vmem %s0, %s264
        %p266 = pneg %p56
        %p267 = pneg %p53
        %p268 = pneg %p77
        %p269 = pneg %p74
        %p270 = pneg %p98
        %p271 = pneg %p95
        %p272 = pneg %p119
        %p273 = pneg %p116
        %p274 = scmp.lt.s32.totalorder %s26, 3
        %s275 = scalar_select %p274, %s26, 3
        %p276 = scmp.lt.s32.totalorder %s25, 1
        %s277 = scalar_select %p276, %s25, 1
        %s278 = smul.addr %s275, 2
        %s279 = sadd.s32 %s277, %s278
        %s280 = smul.addr %s279, 8
        %s281 = scalar_lea.vmem %s4, %s280
        %p282 = pneg %p147
        %p283 = pneg %p144
        %p284 = pneg %p175
        %p285 = pneg %p172
        %s286 = sand.u32 %s162, 1
        %s287 = scalar_lea.sflag [#allocation3], %s286
        %s288 = sand.u32 %s162, 1
        %s289 = smul.addr %s288, 8
        %s290 = scalar_lea.vmem [#allocation2], %s289
        %p291 = pneg %p201
        %p292 = pneg %p198
        %p293 = scmp.lt.s32.totalorder %s25, 1
        %s294 = scalar_select %p293, %s25, 1
        %s295 = smul.addr %s294, 8
        %s296 = scalar_lea.vmem %s6, %s295
        %p297 = scmp.lt.s32.totalorder %s25, 1
        %s298 = scalar_select %p297, %s25, 1
        %p299 = scmp.lt.s32.totalorder %s26, 3
        %s300 = scalar_select %p299, %s26, 3
        %s301 = smul.addr %s298, 4
        %s302 = sadd.s32 %s300, %s301
        %s303 = smul.addr %s302, 8
        %s304 = scalar_lea.vmem %s0, %s303
        %p305 = scmp.lt.s32.totalorder %s26, 3
        %s306 = scalar_select %p305, %s26, 3
        %p307 = scmp.lt.s32.totalorder %s25, 1
        %s308 = scalar_select %p307, %s25, 1
        %s309 = smul.addr %s306, 2
        %s310 = sadd.s32 %s308, %s309
        %s311 = smul.addr %s310, 8
        %s312 = scalar_lea.vmem %s4, %s311
        %p313 = scmp.lt.s32.totalorder %s25, 1
        %s314 = scalar_select %p313, %s25, 1
        %s315 = smul.addr %s314, 8
        %s316 = scalar_lea.vmem %s6, %s315
        %p317 = scmp.eq.s32.totalorder %s26, 0
        // Predicated region
        $region41: #{resblock_forward.4} parent=39 // pred_check
          %p318 = pneg %p317
        $region42: #{resblock_forward.4} parent=39 // pred_check_branch
          %320 = sbr.rel (%p318) target = $region44
        $region43: #{resblock_forward.4} parent=39 // pred_region
          %vm321 = vcmask 15360
          %322 = vst.msk [vmem:[%s316] sm:$0xff] %vm321, 0.0
        $region44: #{resblock_forward.4} parent=39 // pred_fallthru
          _
        %v323 = vld [vmem:[%s3] sm:$0xff]
        %s324 = scalar_lea.vmem %s3, 8
        %v325 = vld [vmem:[%s324] sm:$0xff]
        %s326 = scalar_lea.vmem %s3, 16
        %v327 = vld [vmem:[%s326] sm:$0xff]
        %v328 = vlaneseq
        %v329 = vand.u32 %v328, 127
        %v330 = vld [vmem:[%s1] sm:$0xff]
        %v331 = vld [vmem:[%s2] sm:$0xff]
        %v332 = vld [vmem:[%s312] sm:$0xff]
        %v333 = vld [vmem:[%s304] sm:$0xff]
        %335 = vset.pattern.permute.xlu0 0
        %336 = vperm.xlu0 %335, %v330
        %v337 = vpop.permute.xlu0 %336
        %v339 = vmul.f32 %v333, %v337
        %341 = vset.pattern.permute.xlu0 0
        %342 = vperm.xlu0 %341, %v331
        %v343 = vpop.permute.xlu0 %342
        %v345 = vadd.f32 %v339, %v343
        %v346 = vmax.f32 %v345, 0.0
        %vm347 = vcmp.eq.s32.totalorder %v329, 0
        %348 = vrot.lane.b32.xlu0 %v346, 1
        %v349 = vpop.permute.xlu0 %348
        %351 = vset.pattern.permute.xlu0 0
        %352 = vperm.xlu0 %351, %v332
        %v353 = vpop.permute.xlu0 %352
        %v355 = vsel %vm347, %v353, %v349
        %vm356 = vcmp.eq.s32.totalorder %v329, 127
        %357 = vrot.lane.b32.xlu0 %v346, 127
        %v358 = vpop.permute.xlu0 %357
        %359 = vset.pattern.permute.xlu0 1
        %360 = vperm.xlu0 %359, %v332
        %v361 = vpop.permute.xlu0 %360
        %v363 = vsel %vm356, %v361, %v358
        %vm364 = vcmask 64512
        %v366 = vsel %vm364, %v323, 0
        %368 = vmatprep.subr.mxu0 0.0
        %369 = vmatpush1.msra.mxu0 0.0
        %370 = vmatprep.subr.mxu0 0.0
        %371 = vmatpush1.msra.mxu0 0.0
        %372 = vmatprep.subr.mxu0 0.0
        %373 = vmatpush1.msra.mxu0 0.0
        %374 = vmatprep.subr.mxu0 0.0
        %375 = vmatpush1.msra.mxu0 0.0
        %376 = vmatprep.subr.mxu0 0.0
        %377 = vmatpush1.msra.mxu0 0.0
        %378 = vmatprep.subr.mxu0 0.0
        %379 = vmatpush1.msra.mxu0 0.0
        %380 = vmatprep.subr.mxu0 0.0
        %381 = vmatpush1.msra.mxu0 0.0
        %382 = vmatprep.subr.mxu0 0.0
        %383 = vmatpush1.msra.mxu0 0.0
        %384 = vmatprep.subr.mxu0 0.0
        %385 = vmatpush1.msra.mxu0 0.0
        %386 = vmatprep.subr.mxu0 0.0
        %387 = vmatpush1.msra.mxu0 0.0
        %388 = vmatprep.subr.mxu0 0.0
        %389 = vmatpush1.msra.mxu0 0.0
        %390 = vmatprep.subr.mxu0 0.0
        %391 = vmatpush1.msra.mxu0 0.0
        %392 = vmatprep.subr.mxu0 0.0
        %393 = vmatpush1.msra.mxu0 0.0
        %394 = vmatprep.subr.mxu0 0.0
        %395 = vmatpush1.msra.mxu0 0.0
        %396 = vmatprep.subr.mxu0 0.0
        %397 = vmatpush1.msra.mxu0 0.0
        %398 = vmatprep.subr.mxu0 0.0
        %399 = vmatpush1.msra.mxu0 %v355
        %400 = vmatprep.subr.mxu0 0.0
        %401 = vmatpush2.msra.mxu0 0.0
        %402 = vmatprep.subr.mxu0 0.0
        %403 = vmatpush2.msra.mxu0 0.0
        %404 = vmatprep.subr.mxu0 0.0
        %405 = vmatpush2.msra.mxu0 0.0
        %406 = vmatprep.subr.mxu0 0.0
        %407 = vmatpush2.msra.mxu0 0.0
        %408 = vmatprep.subr.mxu0 0.0
        %409 = vmatpush2.msra.mxu0 0.0
        %410 = vmatprep.subr.mxu0 0.0
        %411 = vmatpush2.msra.mxu0 0.0
        %412 = vmatprep.subr.mxu0 0.0
        %413 = vmatpush2.msra.mxu0 0.0
        %414 = vmatprep.subr.mxu0 0.0
        %415 = vmatpush2.msra.mxu0 0.0
        %416 = vmatprep.subr.mxu0 0.0
        %417 = vmatpush2.msra.mxu0 0.0
        %418 = vmatprep.subr.mxu0 0.0
        %419 = vmatpush2.msra.mxu0 0.0
        %420 = vmatprep.subr.mxu0 0.0
        %421 = vmatpush2.msra.mxu0 0.0
        %422 = vmatprep.subr.mxu0 0.0
        %423 = vmatpush2.msra.mxu0 0.0
        %424 = vmatprep.subr.mxu0 0.0
        %425 = vmatpush2.msra.mxu0 0.0
        %426 = vmatprep.subr.mxu0 0.0
        %427 = vmatpush2.msra.mxu0 0.0
        %428 = vmatprep.subr.mxu0 0.0
        %429 = vmatpush2.msra.mxu0 0.0
        %430 = vmatprep.subr.mxu0 0.0
        %431 = vmatpush2.msra.mxu0 0.0
        %432 = vmatprep.mubr.f32.mxu0 0.0
        %433 = vmatmul.mubr.f32.gmra.mxu0 %v366
        %v434 = vpop.f32.mrf.mxu0
        %v435 = vadd.f32 0.0, %v434
        %v436 = vpop.f32.mrf.mxu0
        %437 = vdwg.mxu0
        %v439 = vsel %vm364, %v325, 0
        %441 = vmatprep.subr.mxu0 0.0
        %442 = vmatpush1.msra.mxu0 0.0
        %443 = vmatprep.subr.mxu0 0.0
        %444 = vmatpush1.msra.mxu0 0.0
        %445 = vmatprep.subr.mxu0 0.0
        %446 = vmatpush1.msra.mxu0 0.0
        %447 = vmatprep.subr.mxu0 0.0
        %448 = vmatpush1.msra.mxu0 0.0
        %449 = vmatprep.subr.mxu0 0.0
        %450 = vmatpush1.msra.mxu0 0.0
        %451 = vmatprep.subr.mxu0 0.0
        %452 = vmatpush1.msra.mxu0 0.0
        %453 = vmatprep.subr.mxu0 0.0
        %454 = vmatpush1.msra.mxu0 0.0
        %455 = vmatprep.subr.mxu0 0.0
        %456 = vmatpush1.msra.mxu0 0.0
        %457 = vmatprep.subr.mxu0 0.0
        %458 = vmatpush1.msra.mxu0 0.0
        %459 = vmatprep.subr.mxu0 0.0
        %460 = vmatpush1.msra.mxu0 0.0
        %461 = vmatprep.subr.mxu0 0.0
        %462 = vmatpush1.msra.mxu0 0.0
        %463 = vmatprep.subr.mxu0 0.0
        %464 = vmatpush1.msra.mxu0 0.0
        %465 = vmatprep.subr.mxu0 0.0
        %466 = vmatpush1.msra.mxu0 0.0
        %467 = vmatprep.subr.mxu0 0.0
        %468 = vmatpush1.msra.mxu0 0.0
        %469 = vmatprep.subr.mxu0 0.0
        %470 = vmatpush1.msra.mxu0 0.0
        %471 = vmatprep.subr.mxu0 0.0
        %472 = vmatpush1.msra.mxu0 %v346
        %473 = vmatprep.subr.mxu0 0.0
        %474 = vmatpush2.msra.mxu0 0.0
        %475 = vmatprep.subr.mxu0 0.0
        %476 = vmatpush2.msra.mxu0 0.0
        %477 = vmatprep.subr.mxu0 0.0
        %478 = vmatpush2.msra.mxu0 0.0
        %479 = vmatprep.subr.mxu0 0.0
        %480 = vmatpush2.msra.mxu0 0.0
        %481 = vmatprep.subr.mxu0 0.0
        %482 = vmatpush2.msra.mxu0 0.0
        %483 = vmatprep.subr.mxu0 0.0
        %484 = vmatpush2.msra.mxu0 0.0
        %485 = vmatprep.subr.mxu0 0.0
        %486 = vmatpush2.msra.mxu0 0.0
        %487 = vmatprep.subr.mxu0 0.0
        %488 = vmatpush2.msra.mxu0 0.0
        %489 = vmatprep.subr.mxu0 0.0
        %490 = vmatpush2.msra.mxu0 0.0
        %491 = vmatprep.subr.mxu0 0.0
        %492 = vmatpush2.msra.mxu0 0.0
        %493 = vmatprep.subr.mxu0 0.0
        %494 = vmatpush2.msra.mxu0 0.0
        %495 = vmatprep.subr.mxu0 0.0
        %496 = vmatpush2.msra.mxu0 0.0
        %497 = vmatprep.subr.mxu0 0.0
        %498 = vmatpush2.msra.mxu0 0.0
        %499 = vmatprep.subr.mxu0 0.0
        %500 = vmatpush2.msra.mxu0 0.0
        %501 = vmatprep.subr.mxu0 0.0
        %502 = vmatpush2.msra.mxu0 0.0
        %503 = vmatprep.subr.mxu0 0.0
        %504 = vmatpush2.msra.mxu0 0.0
        %505 = vmatprep.mubr.f32.mxu0 0.0
        %506 = vmatmul.mubr.f32.gmra.mxu0 %v439
        %v507 = vpop.f32.mrf.mxu0
        %v508 = vadd.f32 %v435, %v507
        %v509 = vpop.f32.mrf.mxu0
        %510 = vdwg.mxu0
        %v512 = vsel %vm364, %v327, 0
        %514 = vmatprep.subr.mxu0 0.0
        %515 = vmatpush1.msra.mxu0 0.0
        %516 = vmatprep.subr.mxu0 0.0
        %517 = vmatpush1.msra.mxu0 0.0
        %518 = vmatprep.subr.mxu0 0.0
        %519 = vmatpush1.msra.mxu0 0.0
        %520 = vmatprep.subr.mxu0 0.0
        %521 = vmatpush1.msra.mxu0 0.0
        %522 = vmatprep.subr.mxu0 0.0
        %523 = vmatpush1.msra.mxu0 0.0
        %524 = vmatprep.subr.mxu0 0.0
        %525 = vmatpush1.msra.mxu0 0.0
        %526 = vmatprep.subr.mxu0 0.0
        %527 = vmatpush1.msra.mxu0 0.0
        %528 = vmatprep.subr.mxu0 0.0
        %529 = vmatpush1.msra.mxu0 0.0
        %530 = vmatprep.subr.mxu0 0.0
        %531 = vmatpush1.msra.mxu0 0.0
        %532 = vmatprep.subr.mxu0 0.0
        %533 = vmatpush1.msra.mxu0 0.0
        %534 = vmatprep.subr.mxu0 0.0
        %535 = vmatpush1.msra.mxu0 0.0
        %536 = vmatprep.subr.mxu0 0.0
        %537 = vmatpush1.msra.mxu0 0.0
        %538 = vmatprep.subr.mxu0 0.0
        %539 = vmatpush1.msra.mxu0 0.0
        %540 = vmatprep.subr.mxu0 0.0
        %541 = vmatpush1.msra.mxu0 0.0
        %542 = vmatprep.subr.mxu0 0.0
        %543 = vmatpush1.msra.mxu0 0.0
        %544 = vmatprep.subr.mxu0 0.0
        %545 = vmatpush1.msra.mxu0 %v363
        %546 = vmatprep.subr.mxu0 0.0
        %547 = vmatpush2.msra.mxu0 0.0
        %548 = vmatprep.subr.mxu0 0.0
        %549 = vmatpush2.msra.mxu0 0.0
        %550 = vmatprep.subr.mxu0 0.0
        %551 = vmatpush2.msra.mxu0 0.0
        %552 = vmatprep.subr.mxu0 0.0
        %553 = vmatpush2.msra.mxu0 0.0
        %554 = vmatprep.subr.mxu0 0.0
        %555 = vmatpush2.msra.mxu0 0.0
        %556 = vmatprep.subr.mxu0 0.0
        %557 = vmatpush2.msra.mxu0 0.0
        %558 = vmatprep.subr.mxu0 0.0
        %559 = vmatpush2.msra.mxu0 0.0
        %560 = vmatprep.subr.mxu0 0.0
        %561 = vmatpush2.msra.mxu0 0.0
        %562 = vmatprep.subr.mxu0 0.0
        %563 = vmatpush2.msra.mxu0 0.0
        %564 = vmatprep.subr.mxu0 0.0
        %565 = vmatpush2.msra.mxu0 0.0
        %566 = vmatprep.subr.mxu0 0.0
        %567 = vmatpush2.msra.mxu0 0.0
        %568 = vmatprep.subr.mxu0 0.0
        %569 = vmatpush2.msra.mxu0 0.0
        %570 = vmatprep.subr.mxu0 0.0
        %571 = vmatpush2.msra.mxu0 0.0
        %572 = vmatprep.subr.mxu0 0.0
        %573 = vmatpush2.msra.mxu0 0.0
        %574 = vmatprep.subr.mxu0 0.0
        %575 = vmatpush2.msra.mxu0 0.0
        %576 = vmatprep.subr.mxu0 0.0
        %577 = vmatpush2.msra.mxu0 0.0
        %578 = vmatprep.mubr.f32.mxu0 0.0
        %579 = vmatmul.mubr.f32.gmra.mxu0 %v512
        %v580 = vpop.f32.mrf.mxu0
        %v581 = vadd.f32 0.0, %v580
        %v582 = vpop.f32.mrf.mxu0
        %583 = vdwg.mxu0
        %v584 = vadd.f32 %v508, %v581
        %585 = vst [vmem:[%s290] sm:$0xff] %v584
        %586 = vadd.xlane.f32.xlu0 %v584
        %v587 = vpop.xlane.xlu0 %586
        %v588 = vmul.f32 %v584, %v584
        %589 = vadd.xlane.f32.xlu0 %v588
        %v590 = vpop.xlane.xlu0 %589
        %vm591 = vcmask 7168
        %v592 = vsel %vm591, %v587, %v590
        %v593 = vadd.f32 %v592, 0.0
        %v594 = vld [vmem:[%s316] sm:$0xff]
        %v595 = vadd.f32 %v594, %v593
        %vm596 = vcmask 15360
        %597 = vst.msk [vmem:[%s316] sm:$0xff] %vm596, %v595
        %s598 = sand.u32 %s162, 1
        %s599 = scalar_lea.sflag [#allocation3], %s598
        %s600 = sand.u32 %s162, 1
        %s601 = smul.addr %s600, 8
        %s602 = scalar_lea.vmem [#allocation2], %s601
        %p603 = scmp.lt.s32.totalorder %s25, 1
        %s604 = scalar_select %p603, %s25, 1
        %s605 = smul.addr %s604, 8
        %s606 = scalar_lea.vmem %s6, %s605
        // Predicated region
        $region45: #{resblock_forward.4} parent=39 // pred_check
          %p607 = pneg %p172
        $region46: #{resblock_forward.4} parent=39 // pred_check_branch
          %609 = sbr.rel (%p607) target = $region48
        $region47: #{resblock_forward.4} parent=39 // pred_region
          %s611 = ssub.s32 128, 128
          %612 = vsyncadd %s599, %s611
          %s613 = smul.addr %s25, 4
          %s614 = sadd.s32 %s26, %s613
          %s615 = smul.addr %s614, 128
          %s616 = scalar_lea.hbm %s5, %s615
          %s618 = sshll.u32 %s602, 4
          %s619 = int_to_ptr.vmem [resolvable:$true] %s618
          %621 = dma.vmem_to_hbm [thread:$0]  %s619, 128, %s616, %s599
        $region48: #{resblock_forward.4} parent=39 // pred_fallthru
          _
        // Predicated region
        $region49: #{resblock_forward.4} parent=39 // pred_check
          %p622 = pneg %p198
        $region50: #{resblock_forward.4} parent=39 // pred_check_branch
          %624 = sbr.rel (%p622) target = $region52
        $region51: #{resblock_forward.4} parent=39 // pred_region
          _
        $region52: #{resblock_forward.4} parent=39 // pred_fallthru
          _
      $region40: #{resblock_forward.4} parent=5 // pred_fallthru
        _
      %p625 = scmp.le.s32.totalorder 2, %s16
      // Predicated region
      $region53: #{resblock_forward.4} parent=5 // pred_check
        %p626 = pneg %p625
      $region54: #{resblock_forward.4} parent=5 // pred_check_branch
        %628 = sbr.rel (%p626) target = $region56
      $region55: #{resblock_forward.4} parent=5 // pred_region
        %s629 = ssub.s32 %s16, 2
        // Predicated region
        $region57: #{resblock_forward.4} parent=55 // pred_check
          %p630 = pneg %p178
        $region58: #{resblock_forward.4} parent=55 // pred_check_branch
          %632 = sbr.rel (%p630) target = $region60
        $region59: #{resblock_forward.4} parent=55 // pred_region
          %s633 = sand.u32 %s163, 1
          %s634 = scalar_lea.sflag [#allocation3], %s633
          %s635 = sand.u32 %s163, 1
          %s636 = smul.addr %s635, 8
          %s637 = scalar_lea.vmem [#allocation2], %s636
          %638 = dma.done %s634, 128
        $region60: #{resblock_forward.4} parent=55 // pred_fallthru
          _
        // Predicated region
        $region61: #{resblock_forward.4} parent=55 // pred_check
          %p639 = pneg %p204
        $region62: #{resblock_forward.4} parent=55 // pred_check_branch
          %641 = sbr.rel (%p639) target = $region64
        $region63: #{resblock_forward.4} parent=55 // pred_region
          %p642 = scmp.lt.s32.totalorder %s27, 1
          %s643 = scalar_select %p642, %s27, 1
          %s644 = smul.addr %s643, 8
          %s645 = scalar_lea.vmem %s6, %s644
        $region64: #{resblock_forward.4} parent=55 // pred_fallthru
          _
      $region56: #{resblock_forward.4} parent=5 // pred_fallthru
        _
    $region6: #{resblock_forward.4} parent=1 // loop_footer
      %s20 = sadd.s32 1, %s16
    $region7: #{resblock_forward.4} parent=1 // loop_footer_branch
      %15 = sbr.rel target = $region3
    $region8: #{resblock_forward.4} parent=1 // loop_exit
      _
    %646 = vsyncpa [#allocation3], 1
    %s647 = scalar_lea.sflag [#allocation3], 1
    %648 = vsyncpa %s647, 1

</llo_original>
